<compile_context>
chip_gen: v7x
topology: tpu7x:2x2x1
jax: 0.10.0
libtpu: 0.0.40
codegen_flags: <defaults>
</compile_context>

<pallas_src>
import functools

import jax
import jax.numpy as jnp
from jax import lax
from jax.experimental import pallas as pl
from jax.experimental.pallas import tpu as pltpu

_BETA = 1.0 / 9.0
_LANE = 128
_SUBLANES = 8
_ROW_MULT = 32                         # sublane-tile safe for f32 / bf16 / int8 blocks
_MAX_WIDTH = 2048                      # cap for the divisor-view search
_TARGET_BLOCK_BYTES = 2 * 1024 * 1024  # ~2 MiB per input block per grid step
_VMEM_LIMIT_BYTES = 40 * 1024 * 1024


def _loss_terms(vals_f32, gts_f32, loss_kind, extra_mask):
    """Elementwise loss + validity mask.

    Uses a true select (jnp.where) so stale / padded VMEM lanes become exactly
    0.0 (never `loss * mask`, which could turn garbage Inf/NaN into NaN).
    """
    mask = gts_f32 != jnp.float32(1.0)          # eff = ~(reg_gts == 1)
    if extra_mask is not None:
        mask = jnp.logical_and(mask, extra_mask)
    target = 2.0 * gts_f32 - 1.0                # est_encode
    diff = vals_f32 - target
    if loss_kind == "smooth_l1":
        n = jnp.abs(diff)
        # 0.5 / beta folded into a compile-time constant multiply (no divide).
        per = jnp.where(n < _BETA, n * n * (0.5 / _BETA), n - 0.5 * _BETA)
    elif loss_kind == "l2":
        per = diff * diff
    else:
        raise ValueError(f"unknown loss {loss_kind!r}")
    per = jnp.where(mask, per, jnp.float32(0.0))
    return per, mask.astype(jnp.float32)


def _est_loss_kernel(vals_ref, gts_ref, fold_ref, sum_ref, cnt_ref, *,
                     loss_kind, block_rows, width, tiles_per_core, total_rows):
    p = pl.program_id(0)   # parallel (core) axis
    i = pl.program_id(1)   # reduction axis

    @pl.when(i == 0)
    def _init():
        sum_ref[...] = jnp.zeros_like(sum_ref)
        cnt_ref[...] = jnp.zeros_like(cnt_ref)

    tile = p * tiles_per_core + i

    def _accumulate(extra_mask):
        # In-kernel upcast: HBM traffic stays at the native input width.
        v = vals_ref[...].astype(jnp.float32)
        g = gts_ref[...].astype(jnp.float32)
        per, maskf = _loss_terms(v, g, loss_kind, extra_mask)
        # Row-fold on the MXU (vextended slot) instead of the VALU:
        #   fold[s, j] = 1.0 iff j % 8 == s, so fold @ per is exactly
        #   per.reshape(-1, 8, width).sum(0) (for any block_rows).
        fold = fold_ref[...]
        sum_ref[...] += jnp.dot(fold, per,
                                preferred_element_type=jnp.float32,
                                precision=lax.Precision.HIGHEST)
        cnt_ref[...] += jnp.dot(fold, maskf,
                                preferred_element_type=jnp.float32,
                                precision=lax.Precision.HIGHEST)

    # Fast path (no iota/cmp row mask) for interior full tiles.  The masked
    # path runs only for the ragged last tile and for clamped duplicate tiles
    # (tile >= num_tiles), whose contribution it zeroes out entirely.
    is_full = (tile + 1) * block_rows <= total_rows

    @pl.when(is_full)
    def _fast():
        _accumulate(None)

    @pl.when(jnp.logical_not(is_full))
    def _ragged():
        base_row = tile * block_rows
        row_ids = base_row + lax.broadcasted_iota(
            jnp.int32, (block_rows, width), 0)
        _accumulate(row_ids < total_rows)


def _num_parallel_cores():
    """2 on chips whose TensorCores share HBM (v4 / v5p / v7x), else 1."""
    try:
        dev = jax.devices()[0]
        if dev.platform != "tpu":
            return 1
        kind = (getattr(dev, "device_kind", "") or "").lower()
        if any(tag in kind for tag in ("v4", "v5p", "v7")):
            return 2
    except Exception:
        pass
    return 1


def _pick_view(n):
    """Find a copy-free 2-D factorization (rows, width) of n, or None.

    Prefers lane-dense widths (multiples of 128).  When n % 128 != 0 it looks
    for a divisor of n whose lane/sublane occupancy is still good, which keeps
    HBM traffic exactly at n elements per input (no prefix-slice copy).
    """
    if n % _LANE == 0:
        return n // _LANE, _LANE
    best, best_score = None, 0.0
    for width in range(_LANE, min(n, _MAX_WIDTH) + 1):
        if n % width:
            continue
        rows = n // width
        lane_eff = width / float(pl.cdiv(width, _LANE) * _LANE)
        sublane_eff = min(rows, _SUBLANES) / float(_SUBLANES)
        score = lane_eff * sublane_eff
        if score > best_score + 1e-9:
            best, best_score = (rows, width), score
    if best is not None and best_score >= 0.6:
        return best
    return None


def est_loss(reg_vals, reg_gts, loss="smooth_l1", size_average=True,
             target_block_bytes=_TARGET_BLOCK_BYTES):
    """Pallas implementation of EstLoss.forward.

    Returns a scalar float32 loss.  Note: if every element has gt == 1.0 the
    mean divides by zero (NaN), matching torch .mean() over an empty selection.
    """
    assert reg_vals.shape == reg_gts.shape
    if loss not in ("smooth_l1", "l2"):
        raise ValueError(f"unknown loss {loss!r}")

    def _canon(x):
        # Keep native <=32-bit dtypes in HBM (upcast happens in-kernel); only
        # 64-bit / exotic dtypes are converted here.
        keep = (jnp.issubdtype(x.dtype, jnp.floating)
                or jnp.issubdtype(x.dtype, jnp.integer)) and x.dtype.itemsize <= 4
        return x if keep else x.astype(jnp.float32)

    flat_vals = _canon(reg_vals).reshape(-1)
    flat_gts = _canon(reg_gts).reshape(-1)
    n = flat_vals.shape[0]

    loss_sum = jnp.float32(0.0)
    valid_cnt = jnp.float32(0.0)

    view = _pick_view(n) if n >= _LANE else None
    if view is not None:
        rows, width = view
    else:
        rows, width = n // _LANE, _LANE
    prefix = rows * width

    if rows > 0:
        if prefix == n:
            # Zero-copy reshape of the contiguous input.
            vals2d = flat_vals.reshape(rows, width)
            gts2d = flat_gts.reshape(rows, width)
        else:
            # Fallback (no good factorization, e.g. prime n): XLA materializes
            # this prefix slice; the <128-element tail is handled below.
            vals2d = flat_vals[:prefix].reshape(rows, width)
            gts2d = flat_gts[:prefix].reshape(rows, width)

        # Byte-based block sizing (~2 MiB per input block), 32-row granule so
        # f32 / bf16 / int8 sublane tiling is always legal.
        itemsize = max(vals2d.dtype.itemsize, gts2d.dtype.itemsize)
        width_padded = pl.cdiv(width, _LANE) * _LANE
        rows_target = max(
            _ROW_MULT,
            (target_block_bytes // (width_padded * itemsize)) // _ROW_MULT * _ROW_MULT)
        block_rows = rows if rows <= rows_target else rows_target

        num_tiles = pl.cdiv(rows, block_rows)
        num_par = min(_num_parallel_cores(), num_tiles)
        tiles_per_core = pl.cdiv(num_tiles, num_par)

        # 0/1 fold matrix for the MXU row-fold: fold[s, j] = (j % 8 == s).
        fold = (jnp.arange(block_rows, dtype=jnp.int32)[None, :] % _SUBLANES
                == jnp.arange(_SUBLANES, dtype=jnp.int32)[:, None]
                ).astype(jnp.float32)

        def in_map(p, i):
            t = p * tiles_per_core + i
            # Clamp so the DMA stays in range; the in-kernel masked path zeroes
            # out any duplicated / out-of-range tile's contribution.
            return (jnp.minimum(t, num_tiles - 1), 0)

        kernel = functools.partial(
            _est_loss_kernel,
            loss_kind=loss,
            block_rows=block_rows,
            width=width,
            tiles_per_core=tiles_per_core,
            total_rows=rows,
        )

        sums, cnts = pl.pallas_call(
            kernel,
            out_shape=(
                jax.ShapeDtypeStruct((num_par, _SUBLANES, width), jnp.float32),
                jax.ShapeDtypeStruct((num_par, _SUBLANES, width), jnp.float32),
            ),
            grid_spec=pltpu.PrefetchScalarGridSpec(
                num_scalar_prefetch=0,
                grid=(num_par, tiles_per_core),
                in_specs=[
                    pl.BlockSpec((block_rows, width), in_map),
                    pl.BlockSpec((block_rows, width), in_map),
                    pl.BlockSpec((_SUBLANES, block_rows), lambda p, i: (0, 0)),
                ],
                out_specs=[
                    pl.BlockSpec((None, _SUBLANES, width), lambda p, i: (p, 0, 0)),
                    pl.BlockSpec((None, _SUBLANES, width), lambda p, i: (p, 0, 0)),
                ],
            ),
            compiler_params=pltpu.CompilerParams(
                # If xprof on v7x shows only one TC active, switch the leading
                # axis to pltpu.CORE_PARALLEL.
                dimension_semantics=("parallel", "arbitrary"),
                vmem_limit_bytes=_VMEM_LIMIT_BYTES,
            ),
        )(vals2d, gts2d, fold)

        loss_sum = loss_sum + jnp.sum(sums, dtype=jnp.float32)
        valid_cnt = valid_cnt + jnp.sum(cnts, dtype=jnp.float32)

    if prefix < n:
        # <128-element tail: tiny pure-JAX epilogue (no big HBM copy).
        tail_per, tail_maskf = _loss_terms(
            flat_vals[prefix:].astype(jnp.float32),
            flat_gts[prefix:].astype(jnp.float32),
            loss, None)
        loss_sum = loss_sum + jnp.sum(tail_per, dtype=jnp.float32)
        valid_cnt = valid_cnt + jnp.sum(tail_maskf, dtype=jnp.float32)

    if size_average:
        # Matches torch .mean() over the boolean-indexed (masked) elements.
        return loss_sum / valid_cnt
    return loss_sum


def _ref_est_loss(reg_vals, reg_gts, loss="smooth_l1", size_average=True):
    """Pure-JAX reference matching the PyTorch module semantics."""
    mask = reg_gts != 1.0
    target = 2.0 * reg_gts - 1.0
    diff = (reg_vals - target).astype(jnp.float32)
    if loss == "smooth_l1":
        n = jnp.abs(diff)
        per = jnp.where(n < _BETA, 0.5 * n * n / _BETA, n - 0.5 * _BETA)
    else:
        per = diff * diff
    per = jnp.where(mask, per, 0.0)
    s = jnp.sum(per)
    if size_average:
        return s / jnp.sum(mask.astype(jnp.float32))
    return s


if __name__ == "__main__":
    key = jax.random.PRNGKey(0)
    k1, k2, k3, k4, k5, k6 = jax.random.split(key, 6)
    gt_choices = jnp.array([0.0, 0.5, 1.0], dtype=jnp.float32)

    # 1) NCHW feature map, n % 128 == 0 -> zero-copy (rows, 128) view.
    shape1 = (2, 4, 16, 16)
    rv1 = jax.random.normal(k1, shape1, dtype=jnp.float32)
    rg1 = jax.random.choice(k2, gt_choices, shape=shape1)
    out = jax.block_until_ready(est_loss(rv1, rg1, loss="smooth_l1"))
    ref = _ref_est_loss(rv1, rg1, loss="smooth_l1")
    assert jnp.allclose(out, ref, rtol=1e-4, atol=1e-5), (out, ref)

    out_l2 = jax.block_until_ready(est_loss(rv1, rg1, loss="l2"))
    ref_l2 = _ref_est_loss(rv1, rg1, loss="l2")
    assert jnp.allclose(out_l2, ref_l2, rtol=1e-4, atol=1e-5), (out_l2, ref_l2)

    # 2) n % 128 != 0 but a divisor view exists (2880 -> (12, 240)): no copy,
    #    no tail, non-128 lane width exercised.
    shape2 = (2, 3, 20, 24)
    rv2 = jax.random.normal(k3, shape2, dtype=jnp.float32)
    rg2 = jax.random.choice(k4, gt_choices, shape=shape2)
    out2 = jax.block_until_ready(est_loss(rv2, rg2, loss="smooth_l1"))
    ref2 = _ref_est_loss(rv2, rg2, loss="smooth_l1")
    assert jnp.allclose(out2, ref2, rtol=1e-4, atol=1e-5), (out2, ref2)

    # 3) Multi-tile grid with a ragged (masked) last tile; a small block-byte
    #    target forces several row tiles (and a 2-way split on megacore chips).
    shape3 = (4, 4, 25, 32)   # 12800 elements -> (100, 128), block_rows = 32
    rv3 = jax.random.normal(k5, shape3, dtype=jnp.float32)
    rg3 = jax.random.choice(k6, gt_choices, shape=shape3)
    out3 = jax.block_until_ready(
        est_loss(rv3, rg3, loss="smooth_l1", target_block_bytes=16 * 1024))
    ref3 = _ref_est_loss(rv3, rg3, loss="smooth_l1")
    assert jnp.allclose(out3, ref3, rtol=1e-4, atol=1e-5), (out3, ref3)

    # 4) Prime element count: exercises the prefix-slice fallback + JAX tail.
    shape4 = (4099,)
    rv4 = jax.random.normal(k1, shape4, dtype=jnp.float32)
    rg4 = jax.random.choice(k2, gt_choices, shape=shape4)
    out4 = jax.block_until_ready(est_loss(rv4, rg4, loss="smooth_l1"))
    ref4 = _ref_est_loss(rv4, rg4, loss="smooth_l1")
    assert jnp.allclose(out4, ref4, rtol=1e-4, atol=1e-5), (out4, ref4)

    print("KERNEL_OK")
</pallas_src>

<mosaic_0001>
module attributes {stable_mosaic.version = 11 : i64} {
  func.func @_est_loss_kernel(%arg0: i32, %arg1: i32, %arg2: memref<16x128xf32, #tpu.memory_space<vmem>>, %arg3: memref<16x128xf32, #tpu.memory_space<vmem>>, %arg4: memref<8x16xf32, #tpu.memory_space<vmem>>, %arg5: memref<1x8x128xf32, #tpu.memory_space<vmem>>, %arg6: memref<1x8x128xf32, #tpu.memory_space<vmem>>) attributes {dimension_semantics = [#tpu.dimension_semantics<parallel>, #tpu.dimension_semantics<arbitrary>], iteration_bounds = array<i64: 1, 1>, scalar_prefetch = 0 : i64, scratch_operands = 0 : i64, tpu.core_type = #tpu.core_type<tc>, window_params = [{transform_indices = @transform_0, window_bounds = array<i64: 16, 128>}, {transform_indices = @transform_1, window_bounds = array<i64: 16, 128>}, {pipeline_mode = #tpu.pipeline_mode<synchronous>, transform_indices = @transform_2, window_bounds = array<i64: 8, 16>}, {transform_indices = @transform_3, window_bounds = array<i64: 1, 8, 128>}, {transform_indices = @transform_4, window_bounds = array<i64: 1, 8, 128>}]} {
    %c0_i32 = arith.constant 0 : i32
    %0 = arith.cmpi eq, %arg1, %c0_i32 : i32
    %1 = arith.extui %0 : i1 to i32
    %c0_i32_0 = arith.constant 0 : i32
    %2 = arith.cmpi ne, %1, %c0_i32_0 : i32
    scf.if %2 {
      %cst = arith.constant 0.000000e+00 : f32
      %13 = vector.broadcast %cst : f32 to vector<8x128xf32>
      %c0 = arith.constant 0 : index
      %c0_5 = arith.constant 0 : index
      %c0_6 = arith.constant 0 : index
      %14 = vector.load %arg5[%c0, %c0_5, %c0_6] : memref<1x8x128xf32, #tpu.memory_space<vmem>>, vector<1x8x128xf32>
      %15 = vector.shape_cast %14 : vector<1x8x128xf32> to vector<8x128xf32>
      %16 = vector.shape_cast %13 : vector<8x128xf32> to vector<1x8x128xf32>
      tpu.vector_store %arg5[%c0, %c0_5, %c0_6], %16 {strides = array<i32>} : memref<1x8x128xf32, #tpu.memory_space<vmem>>, vector<1x8x128xf32>,
      %cst_7 = arith.constant 0.000000e+00 : f32
      %17 = vector.broadcast %cst_7 : f32 to vector<8x128xf32>
      %c0_8 = arith.constant 0 : index
      %c0_9 = arith.constant 0 : index
      %c0_10 = arith.constant 0 : index
      %18 = vector.load %arg6[%c0_8, %c0_9, %c0_10] : memref<1x8x128xf32, #tpu.memory_space<vmem>>, vector<1x8x128xf32>
      %19 = vector.shape_cast %18 : vector<1x8x128xf32> to vector<8x128xf32>
      %20 = vector.shape_cast %17 : vector<8x128xf32> to vector<1x8x128xf32>
      tpu.vector_store %arg6[%c0_8, %c0_9, %c0_10], %20 {strides = array<i32>} : memref<1x8x128xf32, #tpu.memory_space<vmem>>, vector<1x8x128xf32>,
    } else {
    }
    %c1_i32 = arith.constant 1 : i32
    %3 = arith.muli %arg0, %c1_i32 : i32
    %4 = arith.addi %3, %arg1 : i32
    %c1_i32_1 = arith.constant 1 : i32
    %5 = arith.addi %4, %c1_i32_1 : i32
    %c16_i32 = arith.constant 16 : i32
    %6 = arith.muli %5, %c16_i32 : i32
    %c16_i32_2 = arith.constant 16 : i32
    %7 = arith.cmpi sle, %6, %c16_i32_2 : i32
    %8 = arith.extui %7 : i1 to i32
    %c0_i32_3 = arith.constant 0 : i32
    %9 = arith.cmpi ne, %8, %c0_i32_3 : i32
    scf.if %9 {
      %c0 = arith.constant 0 : index
      %c0_5 = arith.constant 0 : index
      %13 = vector.load %arg2[%c0, %c0_5] : memref<16x128xf32, #tpu.memory_space<vmem>>, vector<16x128xf32>
      %c0_6 = arith.constant 0 : index
      %c0_7 = arith.constant 0 : index
      %14 = vector.load %arg3[%c0_6, %c0_7] : memref<16x128xf32, #tpu.memory_space<vmem>>, vector<16x128xf32>
      %cst = arith.constant 1.000000e+00 : f32
      %15 = vector.broadcast %cst : f32 to vector<16x128xf32>
      %16 = arith.cmpf one, %14, %15 : vector<16x128xf32>
      %cst_8 = arith.constant 2.000000e+00 : f32
      %17 = vector.broadcast %cst_8 : f32 to vector<16x128xf32>
      %18 = arith.mulf %17, %14 : vector<16x128xf32>
      %cst_9 = arith.constant 1.000000e+00 : f32
      %19 = vector.broadcast %cst_9 : f32 to vector<16x128xf32>
      %20 = arith.subf %18, %19 : vector<16x128xf32>
      %21 = arith.subf %13, %20 : vector<16x128xf32>
      %22 = math.absf %21 : vector<16x128xf32>
      %cst_10 = arith.constant 0.111111112 : f32
      %23 = vector.broadcast %cst_10 : f32 to vector<16x128xf32>
      %24 = arith.cmpf olt, %22, %23 : vector<16x128xf32>
      %25 = arith.mulf %22, %22 : vector<16x128xf32>
      %cst_11 = arith.constant 4.500000e+00 : f32
      %26 = vector.broadcast %cst_11 : f32 to vector<16x128xf32>
      %27 = arith.mulf %25, %26 : vector<16x128xf32>
      %cst_12 = arith.constant 0.055555556 : f32
      %28 = vector.broadcast %cst_12 : f32 to vector<16x128xf32>
      %29 = arith.subf %22, %28 : vector<16x128xf32>
      %30 = arith.select %24, %27, %29 : vector<16x128xi1>, vector<16x128xf32>
      %cst_13 = arith.constant 0.000000e+00 : f32
      %31 = vector.broadcast %cst_13 : f32 to vector<16x128xf32>
      %32 = arith.select %16, %30, %31 : vector<16x128xi1>, vector<16x128xf32>
      %33 = arith.extui %16 : vector<16x128xi1> to vector<16x128xi32>
      %34 = arith.sitofp %33 : vector<16x128xi32> to vector<16x128xf32>
      %c0_14 = arith.constant 0 : index
      %c0_15 = arith.constant 0 : index
      %35 = vector.load %arg4[%c0_14, %c0_15] : memref<8x16xf32, #tpu.memory_space<vmem>>, vector<8x16xf32>
      %c0_16 = arith.constant 0 : index
      %c0_17 = arith.constant 0 : index
      %c0_18 = arith.constant 0 : index
      %36 = vector.load %arg5[%c0_16, %c0_17, %c0_18] : memref<1x8x128xf32, #tpu.memory_space<vmem>>, vector<1x8x128xf32>
      %37 = vector.shape_cast %36 : vector<1x8x128xf32> to vector<8x128xf32>
      %cst_19 = arith.constant dense<0.000000e+00> : vector<8x128xf32>
      %38 = tpu.matmul %35, %32, %cst_19 {dimension_numbers = #tpu.dot_dimension_numbers<[1], [0], [0], [1], [0, 0, 1, 1], [], []>, precision = #tpu.contract_precision<fp32>} : vector<8x16xf32>, vector<16x128xf32>, vector<8x128xf32> -> vector<8x128xf32>
      %39 = arith.addf %37, %38 : vector<8x128xf32>
      %c0_20 = arith.constant 0 : index
      %c0_21 = arith.constant 0 : index
      %c0_22 = arith.constant 0 : index
      %40 = vector.load %arg5[%c0_20, %c0_21, %c0_22] : memref<1x8x128xf32, #tpu.memory_space<vmem>>, vector<1x8x128xf32>
      %41 = vector.shape_cast %40 : vector<1x8x128xf32> to vector<8x128xf32>
      %42 = vector.shape_cast %39 : vector<8x128xf32> to vector<1x8x128xf32>
      tpu.vector_store %arg5[%c0_20, %c0_21, %c0_22], %42 {strides = array<i32>} : memref<1x8x128xf32, #tpu.memory_space<vmem>>, vector<1x8x128xf32>,
      %c0_23 = arith.constant 0 : index
      %c0_24 = arith.constant 0 : index
      %c0_25 = arith.constant 0 : index
      %43 = vector.load %arg6[%c0_23, %c0_24, %c0_25] : memref<1x8x128xf32, #tpu.memory_space<vmem>>, vector<1x8x128xf32>
      %44 = vector.shape_cast %43 : vector<1x8x128xf32> to vector<8x128xf32>
      %cst_26 = arith.constant dense<0.000000e+00> : vector<8x128xf32>
      %45 = tpu.matmul %35, %34, %cst_26 {dimension_numbers = #tpu.dot_dimension_numbers<[1], [0], [0], [1], [0, 0, 1, 1], [], []>, precision = #tpu.contract_precision<fp32>} : vector<8x16xf32>, vector<16x128xf32>, vector<8x128xf32> -> vector<8x128xf32>
      %46 = arith.addf %44, %45 : vector<8x128xf32>
      %c0_27 = arith.constant 0 : index
      %c0_28 = arith.constant 0 : index
      %c0_29 = arith.constant 0 : index
      %47 = vector.load %arg6[%c0_27, %c0_28, %c0_29] : memref<1x8x128xf32, #tpu.memory_space<vmem>>, vector<1x8x128xf32>
      %48 = vector.shape_cast %47 : vector<1x8x128xf32> to vector<8x128xf32>
      %49 = vector.shape_cast %46 : vector<8x128xf32> to vector<1x8x128xf32>
      tpu.vector_store %arg6[%c0_27, %c0_28, %c0_29], %49 {strides = array<i32>} : memref<1x8x128xf32, #tpu.memory_space<vmem>>, vector<1x8x128xf32>,
    } else {
    }
    %true = arith.constant true
    %10 = arith.xori %7, %true : i1
    %11 = arith.extui %10 : i1 to i32
    %c0_i32_4 = arith.constant 0 : i32
    %12 = arith.cmpi ne, %11, %c0_i32_4 : i32
    scf.if %12 {
      %c16_i32_5 = arith.constant 16 : i32
      %13 = arith.muli %4, %c16_i32_5 : i32
      %14 = tpu.iota {dimensions = array<i32: 0>} : vector<16x128xi32>
      %15 = vector.broadcast %13 : i32 to vector<16x128xi32>
      %16 = arith.addi %15, %14 : vector<16x128xi32>
      %c16_i32_6 = arith.constant 16 : i32
      %17 = vector.broadcast %c16_i32_6 : i32 to vector<16x128xi32>
      %18 = arith.cmpi slt, %16, %17 : vector<16x128xi32>
      %c0 = arith.constant 0 : index
      %c0_7 = arith.constant 0 : index
      %19 = vector.load %arg2[%c0, %c0_7] : memref<16x128xf32, #tpu.memory_space<vmem>>, vector<16x128xf32>
      %c0_8 = arith.constant 0 : index
      %c0_9 = arith.constant 0 : index
      %20 = vector.load %arg3[%c0_8, %c0_9] : memref<16x128xf32, #tpu.memory_space<vmem>>, vector<16x128xf32>
      %cst = arith.constant 1.000000e+00 : f32
      %21 = vector.broadcast %cst : f32 to vector<16x128xf32>
      %22 = arith.cmpf one, %20, %21 : vector<16x128xf32>
      %23 = arith.andi %22, %18 : vector<16x128xi1>
      %cst_10 = arith.constant 2.000000e+00 : f32
      %24 = vector.broadcast %cst_10 : f32 to vector<16x128xf32>
      %25 = arith.mulf %24, %20 : vector<16x128xf32>
      %cst_11 = arith.constant 1.000000e+00 : f32
      %26 = vector.broadcast %cst_11 : f32 to vector<16x128xf32>
      %27 = arith.subf %25, %26 : vector<16x128xf32>
      %28 = arith.subf %19, %27 : vector<16x128xf32>
      %29 = math.absf %28 : vector<16x128xf32>
      %cst_12 = arith.constant 0.111111112 : f32
      %30 = vector.broadcast %cst_12 : f32 to vector<16x128xf32>
      %31 = arith.cmpf olt, %29, %30 : vector<16x128xf32>
      %32 = arith.mulf %29, %29 : vector<16x128xf32>
      %cst_13 = arith.constant 4.500000e+00 : f32
      %33 = vector.broadcast %cst_13 : f32 to vector<16x128xf32>
      %34 = arith.mulf %32, %33 : vector<16x128xf32>
      %cst_14 = arith.constant 0.055555556 : f32
      %35 = vector.broadcast %cst_14 : f32 to vector<16x128xf32>
      %36 = arith.subf %29, %35 : vector<16x128xf32>
      %37 = arith.select %31, %34, %36 : vector<16x128xi1>, vector<16x128xf32>
      %cst_15 = arith.constant 0.000000e+00 : f32
      %38 = vector.broadcast %cst_15 : f32 to vector<16x128xf32>
      %39 = arith.select %23, %37, %38 : vector<16x128xi1>, vector<16x128xf32>
      %40 = arith.extui %23 : vector<16x128xi1> to vector<16x128xi32>
      %41 = arith.sitofp %40 : vector<16x128xi32> to vector<16x128xf32>
      %c0_16 = arith.constant 0 : index
      %c0_17 = arith.constant 0 : index
      %42 = vector.load %arg4[%c0_16, %c0_17] : memref<8x16xf32, #tpu.memory_space<vmem>>, vector<8x16xf32>
      %c0_18 = arith.constant 0 : index
      %c0_19 = arith.constant 0 : index
      %c0_20 = arith.constant 0 : index
      %43 = vector.load %arg5[%c0_18, %c0_19, %c0_20] : memref<1x8x128xf32, #tpu.memory_space<vmem>>, vector<1x8x128xf32>
      %44 = vector.shape_cast %43 : vector<1x8x128xf32> to vector<8x128xf32>
      %cst_21 = arith.constant dense<0.000000e+00> : vector<8x128xf32>
      %45 = tpu.matmul %42, %39, %cst_21 {dimension_numbers = #tpu.dot_dimension_numbers<[1], [0], [0], [1], [0, 0, 1, 1], [], []>, precision = #tpu.contract_precision<fp32>} : vector<8x16xf32>, vector<16x128xf32>, vector<8x128xf32> -> vector<8x128xf32>
      %46 = arith.addf %44, %45 : vector<8x128xf32>
      %c0_22 = arith.constant 0 : index
      %c0_23 = arith.constant 0 : index
      %c0_24 = arith.constant 0 : index
      %47 = vector.load %arg5[%c0_22, %c0_23, %c0_24] : memref<1x8x128xf32, #tpu.memory_space<vmem>>, vector<1x8x128xf32>
      %48 = vector.shape_cast %47 : vector<1x8x128xf32> to vector<8x128xf32>
      %49 = vector.shape_cast %46 : vector<8x128xf32> to vector<1x8x128xf32>
      tpu.vector_store %arg5[%c0_22, %c0_23, %c0_24], %49 {strides = array<i32>} : memref<1x8x128xf32, #tpu.memory_space<vmem>>, vector<1x8x128xf32>,
      %c0_25 = arith.constant 0 : index
      %c0_26 = arith.constant 0 : index
      %c0_27 = arith.constant 0 : index
      %50 = vector.load %arg6[%c0_25, %c0_26, %c0_27] : memref<1x8x128xf32, #tpu.memory_space<vmem>>, vector<1x8x128xf32>
      %51 = vector.shape_cast %50 : vector<1x8x128xf32> to vector<8x128xf32>
      %cst_28 = arith.constant dense<0.000000e+00> : vector<8x128xf32>
      %52 = tpu.matmul %42, %41, %cst_28 {dimension_numbers = #tpu.dot_dimension_numbers<[1], [0], [0], [1], [0, 0, 1, 1], [], []>, precision = #tpu.contract_precision<fp32>} : vector<8x16xf32>, vector<16x128xf32>, vector<8x128xf32> -> vector<8x128xf32>
      %53 = arith.addf %51, %52 : vector<8x128xf32>
      %c0_29 = arith.constant 0 : index
      %c0_30 = arith.constant 0 : index
      %c0_31 = arith.constant 0 : index
      %54 = vector.load %arg6[%c0_29, %c0_30, %c0_31] : memref<1x8x128xf32, #tpu.memory_space<vmem>>, vector<1x8x128xf32>
      %55 = vector.shape_cast %54 : vector<1x8x128xf32> to vector<8x128xf32>
      %56 = vector.shape_cast %53 : vector<8x128xf32> to vector<1x8x128xf32>
      tpu.vector_store %arg6[%c0_29, %c0_30, %c0_31], %56 {strides = array<i32>} : memref<1x8x128xf32, #tpu.memory_space<vmem>>, vector<1x8x128xf32>,
    } else {
    }
    return
  }
  func.func @transform_0(%arg0: i32, %arg1: i32) -> (i32, i32) {
    %c1_i32 = arith.constant 1 : i32
    %0 = arith.muli %arg0, %c1_i32 : i32
    %1 = arith.addi %0, %arg1 : i32
    %c0_i32 = arith.constant 0 : i32
    %2 = arith.minsi %1, %c0_i32 : i32
    %c0_i32_0 = arith.constant 0 : i32
    %c0_i32_1 = arith.constant 0 : i32
    return %2, %c0_i32_0 : i32, i32
  }
  func.func @transform_1(%arg0: i32, %arg1: i32) -> (i32, i32) {
    %c1_i32 = arith.constant 1 : i32
    %0 = arith.muli %arg0, %c1_i32 : i32
    %1 = arith.addi %0, %arg1 : i32
    %c0_i32 = arith.constant 0 : i32
    %2 = arith.minsi %1, %c0_i32 : i32
    %c0_i32_0 = arith.constant 0 : i32
    %c0_i32_1 = arith.constant 0 : i32
    return %2, %c0_i32_0 : i32, i32
  }
  func.func @transform_2(%arg0: i32, %arg1: i32) -> (i32, i32) {
    %c0_i32 = arith.constant 0 : i32
    %c0_i32_0 = arith.constant 0 : i32
    %c0_i32_1 = arith.constant 0 : i32
    return %c0_i32, %c0_i32_0 : i32, i32
  }
  func.func @transform_3(%arg0: i32, %arg1: i32) -> (i32, i32, i32) {
    %c0_i32 = arith.constant 0 : i32
    %c0_i32_0 = arith.constant 0 : i32
    %c0_i32_1 = arith.constant 0 : i32
    return %arg0, %c0_i32, %c0_i32_0 : i32, i32, i32
  }
  func.func @transform_4(%arg0: i32, %arg1: i32) -> (i32, i32, i32) {
    %c0_i32 = arith.constant 0 : i32
    %c0_i32_0 = arith.constant 0 : i32
    %c0_i32_1 = arith.constant 0 : i32
    return %arg0, %c0_i32, %c0_i32_0 : i32, i32, i32
  }
}

</mosaic_0001>

<llo_original>
// kernel: tpu_custom_call.1
$region0: #{tpu_custom_call.1}
  #allocation0 [shape = 'u32[]', space=smem, size = 0x4, offset = 0x4, fixed_abs, tag = 'smem constant byte address 0x4 - core index']
  #allocation1 [shape = 'u32[144,128]{1,0:T(1,128)}', space=vmem, size = 0x12000, scoped, tag = 'internal scratch']
  %s0 = inlined_call_operand.hbm [shape: f32[16,128], index: 0, kind: input, shape index: {}]
  %s1 = inlined_call_operand.hbm [shape: f32[16,128], index: 1, kind: input, shape index: {}]
  %s2 = inlined_call_operand.hbm [shape: f32[8,16], index: 2, kind: input, shape index: {}]
  %s3 = inlined_call_operand.hbm [shape: f32[1,8,128], index: 3, kind: output, shape index: {0}]
  %s4 = inlined_call_operand.hbm [shape: f32[1,8,128], index: 4, kind: output, shape index: {1}]
  %5 = xla_tuple %s3, %s4
  %s6 = sld [smem:[#allocation0]]
  $region54: #{tpu_custom_call.1} parent=0
    _
  %s8 = ssub.s32 1, %s6
  %s9 = scalar_select 0, %s8, %s6
  $region1: #{tpu_custom_call.1} parent=0
    #allocation2 [shape = 'u8[8192]{0}', space=vmem, size = 0x2000, scoped, tag = 'input window, operand 0, single buffered']
    #allocation3 [shape = 's32[1]{0}', space=sflag, size = 0x4, scoped, tag = 'scoped memory for tpu_custom_call.1']
    #allocation4 [shape = 's32[1]{0}', space=sflag, size = 0x4, scoped, tag = 'scoped memory for tpu_custom_call.1']
    #allocation5 [shape = 'u8[8192]{0}', space=vmem, size = 0x2000, scoped, tag = 'input window, operand 1, single buffered']
    #allocation6 [shape = 's32[1]{0}', space=sflag, size = 0x4, scoped, tag = 'scoped memory for tpu_custom_call.1']
    #allocation7 [shape = 'u8[4096]{0}', space=vmem, size = 0x1000, scoped, tag = 'input window, operand 2, single buffered']
    #allocation8 [shape = 'u8[4096]{0}', space=vmem, size = 0x1000, scoped, tag = 'output window, operand 0, single buffered']
    #allocation9 [shape = 'u8[4096]{0}', space=vmem, size = 0x1000, scoped, tag = 'output window, operand 1, single buffered']
    #allocation10 [shape = 's32[1]{0}', space=sflag, size = 0x4, scoped, tag = 'scoped memory for tpu_custom_call.1']
    %10 = vsyncpa [#allocation3], 0
    %11 = vsyncpa [#allocation6], 0
    %12 = vsyncpa [#allocation4], 0
    %13 = vsyncpa [#allocation10], 0
    // Predicated region
    $region2: #{tpu_custom_call.1} parent=1 // pred_check
      _
    $region3: #{tpu_custom_call.1} parent=1 // pred_check_branch
      %15 = sbr.rel (0) target = $region5
    $region4: #{tpu_custom_call.1} parent=1 // pred_region
      %s16 = sadd.s32 0, 0
      %p17 = scmp.lt.s32.totalorder %s16, 0
      %s18 = scalar_select %p17, %s16, 0
      %s19 = smul.u32 2, %s18
      %s21 = ssub.s32 256, 256
      %22 = vsyncadd [#allocation3], %s21
      %s23 = smul.addr %s19, 128
      %s24 = scalar_lea.hbm %s0, %s23
      %s25 = sshll.u32 [#allocation2], 4
      %s26 = int_to_ptr.vmem [resolvable:$true] %s25
      %31 = dma.hbm_to_vmem [thread:$0]  %s24, 256, %s26, [#allocation3], 128, 128, 8
    $region5: #{tpu_custom_call.1} parent=1 // pred_fallthru
      _
    // Predicated region
    $region6: #{tpu_custom_call.1} parent=1 // pred_check
      _
    $region7: #{tpu_custom_call.1} parent=1 // pred_check_branch
      %33 = sbr.rel (0) target = $region9
    $region8: #{tpu_custom_call.1} parent=1 // pred_region
      %s34 = sadd.s32 0, 0
      %p35 = scmp.lt.s32.totalorder %s34, 0
      %s36 = scalar_select %p35, %s34, 0
      %s37 = smul.u32 2, %s36
      %s39 = ssub.s32 256, 256
      %40 = vsyncadd [#allocation6], %s39
      %s41 = smul.addr %s37, 128
      %s42 = scalar_lea.hbm %s1, %s41
      %s43 = sshll.u32 [#allocation5], 4
      %s44 = int_to_ptr.vmem [resolvable:$true] %s43
      %49 = dma.hbm_to_vmem [thread:$0]  %s42, 256, %s44, [#allocation6], 128, 128, 8
    $region9: #{tpu_custom_call.1} parent=1 // pred_fallthru
      _
    // Predicated region
    $region10: #{tpu_custom_call.1} parent=1 // pred_check
      _
    $region11: #{tpu_custom_call.1} parent=1 // pred_check_branch
      %51 = sbr.rel (0) target = $region13
    $region12: #{tpu_custom_call.1} parent=1 // pred_region
      %s53 = ssub.s32 128, 128
      %54 = vsyncadd [#allocation6], %s53
      %s56 = sshll.u32 [#allocation7], 4
      %s57 = int_to_ptr.vmem [resolvable:$true] %s56
      %59 = dma.hbm_to_vmem [thread:$0]  %s2, 128, %s57, [#allocation6]
    $region13: #{tpu_custom_call.1} parent=1 // pred_fallthru
      _
    // Predicated region
    $region14: #{tpu_custom_call.1} parent=1 // pred_check
      _
    $region15: #{tpu_custom_call.1} parent=1 // pred_check_branch
      %61 = sbr.rel (0) target = $region17
    $region16: #{tpu_custom_call.1} parent=1 // pred_region
      %62 = dma.done [#allocation3], 256
    $region17: #{tpu_custom_call.1} parent=1 // pred_fallthru
      _
    // Predicated region
    $region18: #{tpu_custom_call.1} parent=1 // pred_check
      _
    $region19: #{tpu_custom_call.1} parent=1 // pred_check_branch
      %64 = sbr.rel (0) target = $region21
    $region20: #{tpu_custom_call.1} parent=1 // pred_region
      %65 = dma.done [#allocation6], 256
    $region21: #{tpu_custom_call.1} parent=1 // pred_fallthru
      _
    // Predicated region
    $region22: #{tpu_custom_call.1} parent=1 // pred_check
      _
    $region23: #{tpu_custom_call.1} parent=1 // pred_check_branch
      %67 = sbr.rel (0) target = $region25
    $region24: #{tpu_custom_call.1} parent=1 // pred_region
      %68 = dma.done [#allocation6], 128
    $region25: #{tpu_custom_call.1} parent=1 // pred_fallthru
      _
    %s69 = sadd.s32 0, 0
    %p70 = scmp.lt.s32.totalorder %s69, 0
    %s71 = scalar_select %p70, %s69, 0
    %s72 = smul.u32 2, %s71
    %s73 = sadd.s32 0, 0
    %p74 = scmp.lt.s32.totalorder %s73, 0
    %s75 = scalar_select %p74, %s73, 0
    %s76 = smul.u32 2, %s75
    %p77 = scmp.eq.s32.totalorder 0, 0
    // Predicated region
    $region26: #{tpu_custom_call.1} parent=1 // pred_check
      %p78 = pneg %p77
    $region27: #{tpu_custom_call.1} parent=1 // pred_check_branch
      %80 = sbr.rel (%p78) target = $region29
    $region28: #{tpu_custom_call.1} parent=1 // pred_region
      %81 = vst [vmem:[#allocation8] sm:$0xff] 0.0
      %82 = vst [vmem:[#allocation9] sm:$0xff] 0.0
    $region29: #{tpu_custom_call.1} parent=1 // pred_fallthru
      _
    %s83 = sadd.s32 0, 0
    %s84 = sadd.s32 %s83, 1
    %s85 = smul.u32 %s84, 16
    %p86 = scmp.le.s32.totalorder %s85, 16
    // Predicated region
    $region30: #{tpu_custom_call.1} parent=1 // pred_check
      %p87 = pneg %p86
    $region31: #{tpu_custom_call.1} parent=1 // pred_check_branch
      %89 = sbr.rel (%p87) target = $region33
    $region32: #{tpu_custom_call.1} parent=1 // pred_region
      %v90 = vld [vmem:[#allocation2] sm:$0xff]
      %v91 = vld [vmem:[#allocation2 + $0x8] sm:$0xff]
      %v92 = vld [vmem:[#allocation5] sm:$0xff]
      %v93 = vld [vmem:[#allocation5 + $0x8] sm:$0xff]
      %vm94 = vcmp.ne.f32.partialorder %v92, 1.0
      %vm95 = vcmp.ne.f32.partialorder %v93, 1.0
      %v96 = vmul.f32 %v92, 2.0
      %v97 = vmul.f32 %v93, 2.0
      %v98 = vsub.f32 %v96, 1.0
      %v99 = vsub.f32 %v97, 1.0
      %v100 = vsub.f32 %v90, %v98
      %v101 = vsub.f32 %v91, %v99
      %v102 = vand.u32 2147483647, %v100
      %v103 = vand.u32 2147483647, %v101
      %vm104 = vcmp.lt.f32.partialorder %v102, 0.11111111
      %vm105 = vcmp.lt.f32.partialorder %v103, 0.11111111
      %v106 = vmul.f32 %v102, %v102
      %v107 = vmul.f32 %v103, %v103
      %v108 = vmul.f32 %v106, 4.5
      %v109 = vmul.f32 %v107, 4.5
      %v110 = vsub.f32 %v102, 0.055555556
      %v111 = vsub.f32 %v103, 0.055555556
      %v112 = vsel %vm104, %v108, %v110
      %v113 = vsel %vm105, %v109, %v111
      %v114 = vsel %vm94, %v112, 0.0
      %v115 = vsel %vm95, %v113, 0.0
      %v116 = vsel %vm94, 1, 0
      %v117 = vsel %vm95, 1, 0
      %v118 = vcvt.s32.f32 %v116
      %v119 = vcvt.s32.f32 %v117
      %v120 = vld [vmem:[#allocation7] sm:$0xff]
      %v121 = vld [vmem:[#allocation8] sm:$0xff]
      %vm122 = vcmask 130048
      %v124 = vsel %vm122, %v120, 0
      %126 = vmatprep.subr.mxu0 0.0
      %v127 = vand.u32 %v114, 4294901760
      %128 = vmatpush1.msra.mxu0 %v127
      %129 = vmatprep.subr.mxu0 0.0
      %v130 = vand.u32 %v115, 4294901760
      %131 = vmatpush1.msra.mxu0 %v130
      %132 = vmatprep.subr.mxu0 0.0
      %133 = vmatpush1.msra.mxu0 0.0
      %134 = vmatprep.subr.mxu0 0.0
      %135 = vmatpush1.msra.mxu0 0.0
      %136 = vmatprep.subr.mxu0 0.0
      %137 = vmatpush1.msra.mxu0 0.0
      %138 = vmatprep.subr.mxu0 0.0
      %139 = vmatpush1.msra.mxu0 0.0
      %140 = vmatprep.subr.mxu0 0.0
      %141 = vmatpush1.msra.mxu0 0.0
      %142 = vmatprep.subr.mxu0 0.0
      %143 = vmatpush1.msra.mxu0 0.0
      %144 = vmatprep.subr.mxu0 0.0
      %145 = vmatpush1.msra.mxu0 0.0
      %146 = vmatprep.subr.mxu0 0.0
      %147 = vmatpush1.msra.mxu0 0.0
      %148 = vmatprep.subr.mxu0 0.0
      %149 = vmatpush1.msra.mxu0 0.0
      %150 = vmatprep.subr.mxu0 0.0
      %151 = vmatpush1.msra.mxu0 0.0
      %152 = vmatprep.subr.mxu0 0.0
      %153 = vmatpush1.msra.mxu0 0.0
      %154 = vmatprep.subr.mxu0 0.0
      %155 = vmatpush1.msra.mxu0 0.0
      %156 = vmatprep.subr.mxu0 0.0
      %157 = vmatpush1.msra.mxu0 0.0
      %158 = vmatprep.subr.mxu0 0.0
      %159 = vmatpush1.msra.mxu0 0.0
      %160 = vmatprep.subr.mxu0 0.0
      %161 = vmatpush1.msra.mxu0 0.0
      %162 = vmatprep.subr.mxu0 0.0
      %163 = vmatpush1.msra.mxu0 0.0
      %164 = vmatprep.subr.mxu0 0.0
      %165 = vmatpush1.msra.mxu0 0.0
      %166 = vmatprep.subr.mxu0 0.0
      %167 = vmatpush1.msra.mxu0 0.0
      %168 = vmatprep.subr.mxu0 0.0
      %169 = vmatpush1.msra.mxu0 0.0
      %170 = vmatprep.subr.mxu0 0.0
      %171 = vmatpush1.msra.mxu0 0.0
      %172 = vmatprep.subr.mxu0 0.0
      %173 = vmatpush1.msra.mxu0 0.0
      %174 = vmatprep.subr.mxu0 0.0
      %175 = vmatpush1.msra.mxu0 0.0
      %176 = vmatprep.subr.mxu0 0.0
      %177 = vmatpush1.msra.mxu0 0.0
      %178 = vmatprep.subr.mxu0 0.0
      %179 = vmatpush1.msra.mxu0 0.0
      %180 = vmatprep.subr.mxu0 0.0
      %181 = vmatpush1.msra.mxu0 0.0
      %182 = vmatprep.subr.mxu0 0.0
      %183 = vmatpush1.msra.mxu0 0.0
      %184 = vmatprep.subr.mxu0 0.0
      %185 = vmatpush1.msra.mxu0 0.0
      %186 = vmatprep.subr.mxu0 0.0
      %187 = vmatpush1.msra.mxu0 0.0
      %188 = vmatprep.subr.mxu0 0.0
      %189 = vmatpush1.msra.mxu0 0.0
      %190 = vmatprep.subr.mxu0 0.0
      %191 = vmatpush1.msra.mxu0 0.0
      %192 = vmatprep.mubr.f32.mxu0 0.0
      %v193 = vand.u32 %v124, 4294901760
      %v194 = vsub.f32 %v124, %v193
      %v195 = vand.u32 %v194, 4294901760
      %v196 = vsub.f32 %v194, %v195
      %v197 = vand.u32 %v196, 4294901760
      %198 = vmatmul.mubr.f32.gmra.mrb[0].mxu0 %v197
      %v199 = vpop.f32.mrb[0].mxu0
      %v200 = vadd.f32 0.0, %v199
      %v201 = vpop.f32.mrb[0].mxu0
      %202 = vdwg.mxu0
      %203 = vmatprep.subr.mxu0 0.0
      %v204 = vand.u32 %v114, 4294901760
      %v205 = vsub.f32 %v114, %v204
      %v206 = vand.u32 %v205, 4294901760
      %v207 = vsub.f32 %v205, %v206
      %v208 = vand.u32 %v207, 4294901760
      %209 = vmatpush1.msra.mxu0 %v208
      %210 = vmatprep.subr.mxu0 0.0
      %v211 = vand.u32 %v115, 4294901760
      %v212 = vsub.f32 %v115, %v211
      %v213 = vand.u32 %v212, 4294901760
      %v214 = vsub.f32 %v212, %v213
      %v215 = vand.u32 %v214, 4294901760
      %216 = vmatpush1.msra.mxu0 %v215
      %217 = vmatprep.subr.mxu0 0.0
      %218 = vmatpush1.msra.mxu0 0.0
      %219 = vmatprep.subr.mxu0 0.0
      %220 = vmatpush1.msra.mxu0 0.0
      %221 = vmatprep.subr.mxu0 0.0
      %222 = vmatpush1.msra.mxu0 0.0
      %223 = vmatprep.subr.mxu0 0.0
      %224 = vmatpush1.msra.mxu0 0.0
      %225 = vmatprep.subr.mxu0 0.0
      %226 = vmatpush1.msra.mxu0 0.0
      %227 = vmatprep.subr.mxu0 0.0
      %228 = vmatpush1.msra.mxu0 0.0
      %229 = vmatprep.subr.mxu0 0.0
      %230 = vmatpush1.msra.mxu0 0.0
      %231 = vmatprep.subr.mxu0 0.0
      %232 = vmatpush1.msra.mxu0 0.0
      %233 = vmatprep.subr.mxu0 0.0
      %234 = vmatpush1.msra.mxu0 0.0
      %235 = vmatprep.subr.mxu0 0.0
      %236 = vmatpush1.msra.mxu0 0.0
      %237 = vmatprep.subr.mxu0 0.0
      %238 = vmatpush1.msra.mxu0 0.0
      %239 = vmatprep.subr.mxu0 0.0
      %240 = vmatpush1.msra.mxu0 0.0
      %241 = vmatprep.subr.mxu0 0.0
      %242 = vmatpush1.msra.mxu0 0.0
      %243 = vmatprep.subr.mxu0 0.0
      %244 = vmatpush1.msra.mxu0 0.0
      %245 = vmatprep.subr.mxu0 0.0
      %246 = vmatpush1.msra.mxu0 0.0
      %247 = vmatprep.subr.mxu0 0.0
      %248 = vmatpush1.msra.mxu0 0.0
      %249 = vmatprep.subr.mxu0 0.0
      %250 = vmatpush1.msra.mxu0 0.0
      %251 = vmatprep.subr.mxu0 0.0
      %252 = vmatpush1.msra.mxu0 0.0
      %253 = vmatprep.subr.mxu0 0.0
      %254 = vmatpush1.msra.mxu0 0.0
      %255 = vmatprep.subr.mxu0 0.0
      %256 = vmatpush1.msra.mxu0 0.0
      %257 = vmatprep.subr.mxu0 0.0
      %258 = vmatpush1.msra.mxu0 0.0
      %259 = vmatprep.subr.mxu0 0.0
      %260 = vmatpush1.msra.mxu0 0.0
      %261 = vmatprep.subr.mxu0 0.0
      %262 = vmatpush1.msra.mxu0 0.0
      %263 = vmatprep.subr.mxu0 0.0
      %264 = vmatpush1.msra.mxu0 0.0
      %265 = vmatprep.subr.mxu0 0.0
      %266 = vmatpush1.msra.mxu0 0.0
      %267 = vmatprep.subr.mxu0 0.0
      %268 = vmatpush1.msra.mxu0 0.0
      %269 = vmatprep.subr.mxu0 0.0
      %270 = vmatpush1.msra.mxu0 0.0
      %271 = vmatprep.subr.mxu0 0.0
      %272 = vmatpush1.msra.mxu0 0.0
      %273 = vmatprep.subr.mxu0 0.0
      %274 = vmatpush1.msra.mxu0 0.0
      %275 = vmatprep.subr.mxu0 0.0
      %276 = vmatpush1.msra.mxu0 0.0
      %277 = vmatprep.mubr.f32.mxu0 0.0
      %v278 = vand.u32 %v124, 4294901760
      %279 = vmatmul.mubr.f32.gmra.mrb[0].mxu0 %v278
      %v280 = vpop.f32.mrb[0].mxu0
      %v281 = vadd.f32 %v200, %v280
      %v282 = vpop.f32.mrb[0].mxu0
      %283 = vdwg.mxu0
      %284 = vmatprep.subr.mxu0 0.0
      %v285 = vand.u32 %v114, 4294901760
      %v286 = vsub.f32 %v114, %v285
      %287 = vmatpush1.msra.mxu0 %v286
      %288 = vmatprep.subr.mxu0 0.0
      %v289 = vand.u32 %v115, 4294901760
      %v290 = vsub.f32 %v115, %v289
      %291 = vmatpush1.msra.mxu0 %v290
      %292 = vmatprep.subr.mxu0 0.0
      %293 = vmatpush1.msra.mxu0 0.0
      %294 = vmatprep.subr.mxu0 0.0
      %295 = vmatpush1.msra.mxu0 0.0
      %296 = vmatprep.subr.mxu0 0.0
      %297 = vmatpush1.msra.mxu0 0.0
      %298 = vmatprep.subr.mxu0 0.0
      %299 = vmatpush1.msra.mxu0 0.0
      %300 = vmatprep.subr.mxu0 0.0
      %301 = vmatpush1.msra.mxu0 0.0
      %302 = vmatprep.subr.mxu0 0.0
      %303 = vmatpush1.msra.mxu0 0.0
      %304 = vmatprep.subr.mxu0 0.0
      %305 = vmatpush1.msra.mxu0 0.0
      %306 = vmatprep.subr.mxu0 0.0
      %307 = vmatpush1.msra.mxu0 0.0
      %308 = vmatprep.subr.mxu0 0.0
      %309 = vmatpush1.msra.mxu0 0.0
      %310 = vmatprep.subr.mxu0 0.0
      %311 = vmatpush1.msra.mxu0 0.0
      %312 = vmatprep.subr.mxu0 0.0
      %313 = vmatpush1.msra.mxu0 0.0
      %314 = vmatprep.subr.mxu0 0.0
      %315 = vmatpush1.msra.mxu0 0.0
      %316 = vmatprep.subr.mxu0 0.0
      %317 = vmatpush1.msra.mxu0 0.0
      %318 = vmatprep.subr.mxu0 0.0
      %319 = vmatpush1.msra.mxu0 0.0
      %320 = vmatprep.subr.mxu0 0.0
      %321 = vmatpush1.msra.mxu0 0.0
      %322 = vmatprep.subr.mxu0 0.0
      %323 = vmatpush1.msra.mxu0 0.0
      %324 = vmatprep.subr.mxu0 0.0
      %325 = vmatpush1.msra.mxu0 0.0
      %326 = vmatprep.subr.mxu0 0.0
      %327 = vmatpush1.msra.mxu0 0.0
      %328 = vmatprep.subr.mxu0 0.0
      %329 = vmatpush1.msra.mxu0 0.0
      %330 = vmatprep.subr.mxu0 0.0
      %331 = vmatpush1.msra.mxu0 0.0
      %332 = vmatprep.subr.mxu0 0.0
      %333 = vmatpush1.msra.mxu0 0.0
      %334 = vmatprep.subr.mxu0 0.0
      %335 = vmatpush1.msra.mxu0 0.0
      %336 = vmatprep.subr.mxu0 0.0
      %337 = vmatpush1.msra.mxu0 0.0
      %338 = vmatprep.subr.mxu0 0.0
      %339 = vmatpush1.msra.mxu0 0.0
      %340 = vmatprep.subr.mxu0 0.0
      %341 = vmatpush1.msra.mxu0 0.0
      %342 = vmatprep.subr.mxu0 0.0
      %343 = vmatpush1.msra.mxu0 0.0
      %344 = vmatprep.subr.mxu0 0.0
      %345 = vmatpush1.msra.mxu0 0.0
      %346 = vmatprep.subr.mxu0 0.0
      %347 = vmatpush1.msra.mxu0 0.0
      %348 = vmatprep.subr.mxu0 0.0
      %349 = vmatpush1.msra.mxu0 0.0
      %350 = vmatprep.subr.mxu0 0.0
      %351 = vmatpush1.msra.mxu0 0.0
      %352 = vmatprep.mubr.f32.mxu0 0.0
      %v353 = vand.u32 %v124, 4294901760
      %v354 = vsub.f32 %v124, %v353
      %355 = vmatmul.mubr.f32.gmra.mrb[0].mxu0 %v354
      %v356 = vpop.f32.mrb[0].mxu0
      %v357 = vadd.f32 %v281, %v356
      %v358 = vpop.f32.mrb[0].mxu0
      %359 = vdwg.mxu0
      %360 = vmatprep.subr.mxu0 0.0
      %v361 = vand.u32 %v114, 4294901760
      %362 = vmatpush1.msra.mxu0 %v361
      %363 = vmatprep.subr.mxu0 0.0
      %v364 = vand.u32 %v115, 4294901760
      %365 = vmatpush1.msra.mxu0 %v364
      %366 = vmatprep.subr.mxu0 0.0
      %367 = vmatpush1.msra.mxu0 0.0
      %368 = vmatprep.subr.mxu0 0.0
      %369 = vmatpush1.msra.mxu0 0.0
      %370 = vmatprep.subr.mxu0 0.0
      %371 = vmatpush1.msra.mxu0 0.0
      %372 = vmatprep.subr.mxu0 0.0
      %373 = vmatpush1.msra.mxu0 0.0
      %374 = vmatprep.subr.mxu0 0.0
      %375 = vmatpush1.msra.mxu0 0.0
      %376 = vmatprep.subr.mxu0 0.0
      %377 = vmatpush1.msra.mxu0 0.0
      %378 = vmatprep.subr.mxu0 0.0
      %379 = vmatpush1.msra.mxu0 0.0
      %380 = vmatprep.subr.mxu0 0.0
      %381 = vmatpush1.msra.mxu0 0.0
      %382 = vmatprep.subr.mxu0 0.0
      %383 = vmatpush1.msra.mxu0 0.0
      %384 = vmatprep.subr.mxu0 0.0
      %385 = vmatpush1.msra.mxu0 0.0
      %386 = vmatprep.subr.mxu0 0.0
      %387 = vmatpush1.msra.mxu0 0.0
      %388 = vmatprep.subr.mxu0 0.0
      %389 = vmatpush1.msra.mxu0 0.0
      %390 = vmatprep.subr.mxu0 0.0
      %391 = vmatpush1.msra.mxu0 0.0
      %392 = vmatprep.subr.mxu0 0.0
      %393 = vmatpush1.msra.mxu0 0.0
      %394 = vmatprep.subr.mxu0 0.0
      %395 = vmatpush1.msra.mxu0 0.0
      %396 = vmatprep.subr.mxu0 0.0
      %397 = vmatpush1.msra.mxu0 0.0
      %398 = vmatprep.subr.mxu0 0.0
      %399 = vmatpush1.msra.mxu0 0.0
      %400 = vmatprep.subr.mxu0 0.0
      %401 = vmatpush1.msra.mxu0 0.0
      %402 = vmatprep.subr.mxu0 0.0
      %403 = vmatpush1.msra.mxu0 0.0
      %404 = vmatprep.subr.mxu0 0.0
      %405 = vmatpush1.msra.mxu0 0.0
      %406 = vmatprep.subr.mxu0 0.0
      %407 = vmatpush1.msra.mxu0 0.0
      %408 = vmatprep.subr.mxu0 0.0
      %409 = vmatpush1.msra.mxu0 0.0
      %410 = vmatprep.subr.mxu0 0.0
      %411 = vmatpush1.msra.mxu0 0.0
      %412 = vmatprep.subr.mxu0 0.0
      %413 = vmatpush1.msra.mxu0 0.0
      %414 = vmatprep.subr.mxu0 0.0
      %415 = vmatpush1.msra.mxu0 0.0
      %416 = vmatprep.subr.mxu0 0.0
      %417 = vmatpush1.msra.mxu0 0.0
      %418 = vmatprep.subr.mxu0 0.0
      %419 = vmatpush1.msra.mxu0 0.0
      %420 = vmatprep.subr.mxu0 0.0
      %421 = vmatpush1.msra.mxu0 0.0
      %422 = vmatprep.subr.mxu0 0.0
      %423 = vmatpush1.msra.mxu0 0.0
      %424 = vmatprep.subr.mxu0 0.0
      %425 = vmatpush1.msra.mxu0 0.0
      %426 = vmatprep.mubr.f32.mxu0 0.0
      %v427 = vand.u32 %v124, 4294901760
      %v428 = vsub.f32 %v124, %v427
      %v429 = vand.u32 %v428, 4294901760
      %430 = vmatmul.mubr.f32.gmra.mrb[0].mxu0 %v429
      %v431 = vpop.f32.mrb[0].mxu0
      %v432 = vadd.f32 %v357, %v431
      %v433 = vpop.f32.mrb[0].mxu0
      %434 = vdwg.mxu0
      %435 = vmatprep.subr.mxu0 0.0
      %v436 = vand.u32 %v114, 4294901760
      %v437 = vsub.f32 %v114, %v436
      %v438 = vand.u32 %v437, 4294901760
      %439 = vmatpush1.msra.mxu0 %v438
      %440 = vmatprep.subr.mxu0 0.0
      %v441 = vand.u32 %v115, 4294901760
      %v442 = vsub.f32 %v115, %v441
      %v443 = vand.u32 %v442, 4294901760
      %444 = vmatpush1.msra.mxu0 %v443
      %445 = vmatprep.subr.mxu0 0.0
      %446 = vmatpush1.msra.mxu0 0.0
      %447 = vmatprep.subr.mxu0 0.0
      %448 = vmatpush1.msra.mxu0 0.0
      %449 = vmatprep.subr.mxu0 0.0
      %450 = vmatpush1.msra.mxu0 0.0
      %451 = vmatprep.subr.mxu0 0.0
      %452 = vmatpush1.msra.mxu0 0.0
      %453 = vmatprep.subr.mxu0 0.0
      %454 = vmatpush1.msra.mxu0 0.0
      %455 = vmatprep.subr.mxu0 0.0
      %456 = vmatpush1.msra.mxu0 0.0
      %457 = vmatprep.subr.mxu0 0.0
      %458 = vmatpush1.msra.mxu0 0.0
      %459 = vmatprep.subr.mxu0 0.0
      %460 = vmatpush1.msra.mxu0 0.0
      %461 = vmatprep.subr.mxu0 0.0
      %462 = vmatpush1.msra.mxu0 0.0
      %463 = vmatprep.subr.mxu0 0.0
      %464 = vmatpush1.msra.mxu0 0.0
      %465 = vmatprep.subr.mxu0 0.0
      %466 = vmatpush1.msra.mxu0 0.0
      %467 = vmatprep.subr.mxu0 0.0
      %468 = vmatpush1.msra.mxu0 0.0
      %469 = vmatprep.subr.mxu0 0.0
      %470 = vmatpush1.msra.mxu0 0.0
      %471 = vmatprep.subr.mxu0 0.0
      %472 = vmatpush1.msra.mxu0 0.0
      %473 = vmatprep.subr.mxu0 0.0
      %474 = vmatpush1.msra.mxu0 0.0
      %475 = vmatprep.subr.mxu0 0.0
      %476 = vmatpush1.msra.mxu0 0.0
      %477 = vmatprep.subr.mxu0 0.0
      %478 = vmatpush1.msra.mxu0 0.0
      %479 = vmatprep.subr.mxu0 0.0
      %480 = vmatpush1.msra.mxu0 0.0
      %481 = vmatprep.subr.mxu0 0.0
      %482 = vmatpush1.msra.mxu0 0.0
      %483 = vmatprep.subr.mxu0 0.0
      %484 = vmatpush1.msra.mxu0 0.0
      %485 = vmatprep.subr.mxu0 0.0
      %486 = vmatpush1.msra.mxu0 0.0
      %487 = vmatprep.subr.mxu0 0.0
      %488 = vmatpush1.msra.mxu0 0.0
      %489 = vmatprep.subr.mxu0 0.0
      %490 = vmatpush1.msra.mxu0 0.0
      %491 = vmatprep.subr.mxu0 0.0
      %492 = vmatpush1.msra.mxu0 0.0
      %493 = vmatprep.subr.mxu0 0.0
      %494 = vmatpush1.msra.mxu0 0.0
      %495 = vmatprep.subr.mxu0 0.0
      %496 = vmatpush1.msra.mxu0 0.0
      %497 = vmatprep.subr.mxu0 0.0
      %498 = vmatpush1.msra.mxu0 0.0
      %499 = vmatprep.subr.mxu0 0.0
      %500 = vmatpush1.msra.mxu0 0.0
      %501 = vmatprep.subr.mxu0 0.0
      %502 = vmatpush1.msra.mxu0 0.0
      %503 = vmatprep.subr.mxu0 0.0
      %504 = vmatpush1.msra.mxu0 0.0
      %505 = vmatprep.mubr.f32.mxu0 0.0
      %v506 = vand.u32 %v124, 4294901760
      %507 = vmatmul.mubr.f32.gmra.mrb[0].mxu0 %v506
      %v508 = vpop.f32.mrb[0].mxu0
      %v509 = vadd.f32 %v432, %v508
      %v510 = vpop.f32.mrb[0].mxu0
      %511 = vdwg.mxu0
      %512 = vmatprep.subr.mxu0 0.0
      %v513 = vand.u32 %v114, 4294901760
      %514 = vmatpush1.msra.mxu0 %v513
      %515 = vmatprep.subr.mxu0 0.0
      %v516 = vand.u32 %v115, 4294901760
      %517 = vmatpush1.msra.mxu0 %v516
      %518 = vmatprep.subr.mxu0 0.0
      %519 = vmatpush1.msra.mxu0 0.0
      %520 = vmatprep.subr.mxu0 0.0
      %521 = vmatpush1.msra.mxu0 0.0
      %522 = vmatprep.subr.mxu0 0.0
      %523 = vmatpush1.msra.mxu0 0.0
      %524 = vmatprep.subr.mxu0 0.0
      %525 = vmatpush1.msra.mxu0 0.0
      %526 = vmatprep.subr.mxu0 0.0
      %527 = vmatpush1.msra.mxu0 0.0
      %528 = vmatprep.subr.mxu0 0.0
      %529 = vmatpush1.msra.mxu0 0.0
      %530 = vmatprep.subr.mxu0 0.0
      %531 = vmatpush1.msra.mxu0 0.0
      %532 = vmatprep.subr.mxu0 0.0
      %533 = vmatpush1.msra.mxu0 0.0
      %534 = vmatprep.subr.mxu0 0.0
      %535 = vmatpush1.msra.mxu0 0.0
      %536 = vmatprep.subr.mxu0 0.0
      %537 = vmatpush1.msra.mxu0 0.0
      %538 = vmatprep.subr.mxu0 0.0
      %539 = vmatpush1.msra.mxu0 0.0
      %540 = vmatprep.subr.mxu0 0.0
      %541 = vmatpush1.msra.mxu0 0.0
      %542 = vmatprep.subr.mxu0 0.0
      %543 = vmatpush1.msra.mxu0 0.0
      %544 = vmatprep.subr.mxu0 0.0
      %545 = vmatpush1.msra.mxu0 0.0
      %546 = vmatprep.subr.mxu0 0.0
      %547 = vmatpush1.msra.mxu0 0.0
      %548 = vmatprep.subr.mxu0 0.0
      %549 = vmatpush1.msra.mxu0 0.0
      %550 = vmatprep.subr.mxu0 0.0
      %551 = vmatpush1.msra.mxu0 0.0
      %552 = vmatprep.subr.mxu0 0.0
      %553 = vmatpush1.msra.mxu0 0.0
      %554 = vmatprep.subr.mxu0 0.0
      %555 = vmatpush1.msra.mxu0 0.0
      %556 = vmatprep.subr.mxu0 0.0
      %557 = vmatpush1.msra.mxu0 0.0
      %558 = vmatprep.subr.mxu0 0.0
      %559 = vmatpush1.msra.mxu0 0.0
      %560 = vmatprep.subr.mxu0 0.0
      %561 = vmatpush1.msra.mxu0 0.0
      %562 = vmatprep.subr.mxu0 0.0
      %563 = vmatpush1.msra.mxu0 0.0
      %564 = vmatprep.subr.mxu0 0.0
      %565 = vmatpush1.msra.mxu0 0.0
      %566 = vmatprep.subr.mxu0 0.0
      %567 = vmatpush1.msra.mxu0 0.0
      %568 = vmatprep.subr.mxu0 0.0
      %569 = vmatpush1.msra.mxu0 0.0
      %570 = vmatprep.subr.mxu0 0.0
      %571 = vmatpush1.msra.mxu0 0.0
      %572 = vmatprep.subr.mxu0 0.0
      %573 = vmatpush1.msra.mxu0 0.0
      %574 = vmatprep.subr.mxu0 0.0
      %575 = vmatpush1.msra.mxu0 0.0
      %576 = vmatprep.subr.mxu0 0.0
      %577 = vmatpush1.msra.mxu0 0.0
      %578 = vmatprep.mubr.f32.mxu0 0.0
      %v579 = vand.u32 %v124, 4294901760
      %580 = vmatmul.mubr.f32.gmra.mrb[0].mxu0 %v579
      %v581 = vpop.f32.mrb[0].mxu0
      %v582 = vadd.f32 %v509, %v581
      %v583 = vpop.f32.mrb[0].mxu0
      %584 = vdwg.mxu0
      %v585 = vadd.f32 %v121, %v582
      %586 = vst [vmem:[#allocation8] sm:$0xff] %v585
      %v587 = vld [vmem:[#allocation9] sm:$0xff]
      %588 = vmatprep.subr.mxu0 0.0
      %v589 = vand.u32 %v118, 4294901760
      %590 = vmatpush1.msra.mxu0 %v589
      %591 = vmatprep.subr.mxu0 0.0
      %v592 = vand.u32 %v119, 4294901760
      %593 = vmatpush1.msra.mxu0 %v592
      %594 = vmatprep.subr.mxu0 0.0
      %595 = vmatpush1.msra.mxu0 0.0
      %596 = vmatprep.subr.mxu0 0.0
      %597 = vmatpush1.msra.mxu0 0.0
      %598 = vmatprep.subr.mxu0 0.0
      %599 = vmatpush1.msra.mxu0 0.0
      %600 = vmatprep.subr.mxu0 0.0
      %601 = vmatpush1.msra.mxu0 0.0
      %602 = vmatprep.subr.mxu0 0.0
      %603 = vmatpush1.msra.mxu0 0.0
      %604 = vmatprep.subr.mxu0 0.0
      %605 = vmatpush1.msra.mxu0 0.0
      %606 = vmatprep.subr.mxu0 0.0
      %607 = vmatpush1.msra.mxu0 0.0
      %608 = vmatprep.subr.mxu0 0.0
      %609 = vmatpush1.msra.mxu0 0.0
      %610 = vmatprep.subr.mxu0 0.0
      %611 = vmatpush1.msra.mxu0 0.0
      %612 = vmatprep.subr.mxu0 0.0
      %613 = vmatpush1.msra.mxu0 0.0
      %614 = vmatprep.subr.mxu0 0.0
      %615 = vmatpush1.msra.mxu0 0.0
      %616 = vmatprep.subr.mxu0 0.0
      %617 = vmatpush1.msra.mxu0 0.0
      %618 = vmatprep.subr.mxu0 0.0
      %619 = vmatpush1.msra.mxu0 0.0
      %620 = vmatprep.subr.mxu0 0.0
      %621 = vmatpush1.msra.mxu0 0.0
      %622 = vmatprep.subr.mxu0 0.0
      %623 = vmatpush1.msra.mxu0 0.0
      %624 = vmatprep.subr.mxu0 0.0
      %625 = vmatpush1.msra.mxu0 0.0
      %626 = vmatprep.subr.mxu0 0.0
      %627 = vmatpush1.msra.mxu0 0.0
      %628 = vmatprep.subr.mxu0 0.0
      %629 = vmatpush1.msra.mxu0 0.0
      %630 = vmatprep.subr.mxu0 0.0
      %631 = vmatpush1.msra.mxu0 0.0
      %632 = vmatprep.subr.mxu0 0.0
      %633 = vmatpush1.msra.mxu0 0.0
      %634 = vmatprep.subr.mxu0 0.0
      %635 = vmatpush1.msra.mxu0 0.0
      %636 = vmatprep.subr.mxu0 0.0
      %637 = vmatpush1.msra.mxu0 0.0
      %638 = vmatprep.subr.mxu0 0.0
      %639 = vmatpush1.msra.mxu0 0.0
      %640 = vmatprep.subr.mxu0 0.0
      %641 = vmatpush1.msra.mxu0 0.0
      %642 = vmatprep.subr.mxu0 0.0
      %643 = vmatpush1.msra.mxu0 0.0
      %644 = vmatprep.subr.mxu0 0.0
      %645 = vmatpush1.msra.mxu0 0.0
      %646 = vmatprep.subr.mxu0 0.0
      %647 = vmatpush1.msra.mxu0 0.0
      %648 = vmatprep.subr.mxu0 0.0
      %649 = vmatpush1.msra.mxu0 0.0
      %650 = vmatprep.subr.mxu0 0.0
      %651 = vmatpush1.msra.mxu0 0.0
      %652 = vmatprep.subr.mxu0 0.0
      %653 = vmatpush1.msra.mxu0 0.0
      %654 = vmatprep.mubr.f32.mxu0 0.0
      %v655 = vand.u32 %v124, 4294901760
      %v656 = vsub.f32 %v124, %v655
      %v657 = vand.u32 %v656, 4294901760
      %v658 = vsub.f32 %v656, %v657
      %v659 = vand.u32 %v658, 4294901760
      %660 = vmatmul.mubr.f32.gmra.mrb[0].mxu0 %v659
      %v661 = vpop.f32.mrb[0].mxu0
      %v662 = vadd.f32 0.0, %v661
      %v663 = vpop.f32.mrb[0].mxu0
      %664 = vdwg.mxu0
      %665 = vmatprep.subr.mxu0 0.0
      %v666 = vand.u32 %v118, 4294901760
      %v667 = vsub.f32 %v118, %v666
      %v668 = vand.u32 %v667, 4294901760
      %v669 = vsub.f32 %v667, %v668
      %v670 = vand.u32 %v669, 4294901760
      %671 = vmatpush1.msra.mxu0 %v670
      %672 = vmatprep.subr.mxu0 0.0
      %v673 = vand.u32 %v119, 4294901760
      %v674 = vsub.f32 %v119, %v673
      %v675 = vand.u32 %v674, 4294901760
      %v676 = vsub.f32 %v674, %v675
      %v677 = vand.u32 %v676, 4294901760
      %678 = vmatpush1.msra.mxu0 %v677
      %679 = vmatprep.subr.mxu0 0.0
      %680 = vmatpush1.msra.mxu0 0.0
      %681 = vmatprep.subr.mxu0 0.0
      %682 = vmatpush1.msra.mxu0 0.0
      %683 = vmatprep.subr.mxu0 0.0
      %684 = vmatpush1.msra.mxu0 0.0
      %685 = vmatprep.subr.mxu0 0.0
      %686 = vmatpush1.msra.mxu0 0.0
      %687 = vmatprep.subr.mxu0 0.0
      %688 = vmatpush1.msra.mxu0 0.0
      %689 = vmatprep.subr.mxu0 0.0
      %690 = vmatpush1.msra.mxu0 0.0
      %691 = vmatprep.subr.mxu0 0.0
      %692 = vmatpush1.msra.mxu0 0.0
      %693 = vmatprep.subr.mxu0 0.0
      %694 = vmatpush1.msra.mxu0 0.0
      %695 = vmatprep.subr.mxu0 0.0
      %696 = vmatpush1.msra.mxu0 0.0
      %697 = vmatprep.subr.mxu0 0.0
      %698 = vmatpush1.msra.mxu0 0.0
      %699 = vmatprep.subr.mxu0 0.0
      %700 = vmatpush1.msra.mxu0 0.0
      %701 = vmatprep.subr.mxu0 0.0
      %702 = vmatpush1.msra.mxu0 0.0
      %703 = vmatprep.subr.mxu0 0.0
      %704 = vmatpush1.msra.mxu0 0.0
      %705 = vmatprep.subr.mxu0 0.0
      %706 = vmatpush1.msra.mxu0 0.0
      %707 = vmatprep.subr.mxu0 0.0
      %708 = vmatpush1.msra.mxu0 0.0
      %709 = vmatprep.subr.mxu0 0.0
      %710 = vmatpush1.msra.mxu0 0.0
      %711 = vmatprep.subr.mxu0 0.0
      %712 = vmatpush1.msra.mxu0 0.0
      %713 = vmatprep.subr.mxu0 0.0
      %714 = vmatpush1.msra.mxu0 0.0
      %715 = vmatprep.subr.mxu0 0.0
      %716 = vmatpush1.msra.mxu0 0.0
      %717 = vmatprep.subr.mxu0 0.0
      %718 = vmatpush1.msra.mxu0 0.0
      %719 = vmatprep.subr.mxu0 0.0
      %720 = vmatpush1.msra.mxu0 0.0
      %721 = vmatprep.subr.mxu0 0.0
      %722 = vmatpush1.msra.mxu0 0.0
      %723 = vmatprep.subr.mxu0 0.0
      %724 = vmatpush1.msra.mxu0 0.0
      %725 = vmatprep.subr.mxu0 0.0
      %726 = vmatpush1.msra.mxu0 0.0
      %727 = vmatprep.subr.mxu0 0.0
      %728 = vmatpush1.msra.mxu0 0.0
      %729 = vmatprep.subr.mxu0 0.0
      %730 = vmatpush1.msra.mxu0 0.0
      %731 = vmatprep.subr.mxu0 0.0
      %732 = vmatpush1.msra.mxu0 0.0
      %733 = vmatprep.subr.mxu0 0.0
      %734 = vmatpush1.msra.mxu0 0.0
      %735 = vmatprep.subr.mxu0 0.0
      %736 = vmatpush1.msra.mxu0 0.0
      %737 = vmatprep.subr.mxu0 0.0
      %738 = vmatpush1.msra.mxu0 0.0
      %739 = vmatprep.mubr.f32.mxu0 0.0
      %v740 = vand.u32 %v124, 4294901760
      %741 = vmatmul.mubr.f32.gmra.mrb[0].mxu0 %v740
      %v742 = vpop.f32.mrb[0].mxu0
      %v743 = vadd.f32 %v662, %v742
      %v744 = vpop.f32.mrb[0].mxu0
      %745 = vdwg.mxu0
      %746 = vmatprep.subr.mxu0 0.0
      %v747 = vand.u32 %v118, 4294901760
      %v748 = vsub.f32 %v118, %v747
      %749 = vmatpush1.msra.mxu0 %v748
      %750 = vmatprep.subr.mxu0 0.0
      %v751 = vand.u32 %v119, 4294901760
      %v752 = vsub.f32 %v119, %v751
      %753 = vmatpush1.msra.mxu0 %v752
      %754 = vmatprep.subr.mxu0 0.0
      %755 = vmatpush1.msra.mxu0 0.0
      %756 = vmatprep.subr.mxu0 0.0
      %757 = vmatpush1.msra.mxu0 0.0
      %758 = vmatprep.subr.mxu0 0.0
      %759 = vmatpush1.msra.mxu0 0.0
      %760 = vmatprep.subr.mxu0 0.0
      %761 = vmatpush1.msra.mxu0 0.0
      %762 = vmatprep.subr.mxu0 0.0
      %763 = vmatpush1.msra.mxu0 0.0
      %764 = vmatprep.subr.mxu0 0.0
      %765 = vmatpush1.msra.mxu0 0.0
      %766 = vmatprep.subr.mxu0 0.0
      %767 = vmatpush1.msra.mxu0 0.0
      %768 = vmatprep.subr.mxu0 0.0
      %769 = vmatpush1.msra.mxu0 0.0
      %770 = vmatprep.subr.mxu0 0.0
      %771 = vmatpush1.msra.mxu0 0.0
      %772 = vmatprep.subr.mxu0 0.0
      %773 = vmatpush1.msra.mxu0 0.0
      %774 = vmatprep.subr.mxu0 0.0
      %775 = vmatpush1.msra.mxu0 0.0
      %776 = vmatprep.subr.mxu0 0.0
      %777 = vmatpush1.msra.mxu0 0.0
      %778 = vmatprep.subr.mxu0 0.0
      %779 = vmatpush1.msra.mxu0 0.0
      %780 = vmatprep.subr.mxu0 0.0
      %781 = vmatpush1.msra.mxu0 0.0
      %782 = vmatprep.subr.mxu0 0.0
      %783 = vmatpush1.msra.mxu0 0.0
      %784 = vmatprep.subr.mxu0 0.0
      %785 = vmatpush1.msra.mxu0 0.0
      %786 = vmatprep.subr.mxu0 0.0
      %787 = vmatpush1.msra.mxu0 0.0
      %788 = vmatprep.subr.mxu0 0.0
      %789 = vmatpush1.msra.mxu0 0.0
      %790 = vmatprep.subr.mxu0 0.0
      %791 = vmatpush1.msra.mxu0 0.0
      %792 = vmatprep.subr.mxu0 0.0
      %793 = vmatpush1.msra.mxu0 0.0
      %794 = vmatprep.subr.mxu0 0.0
      %795 = vmatpush1.msra.mxu0 0.0
      %796 = vmatprep.subr.mxu0 0.0
      %797 = vmatpush1.msra.mxu0 0.0
      %798 = vmatprep.subr.mxu0 0.0
      %799 = vmatpush1.msra.mxu0 0.0
      %800 = vmatprep.subr.mxu0 0.0
      %801 = vmatpush1.msra.mxu0 0.0
      %802 = vmatprep.subr.mxu0 0.0
      %803 = vmatpush1.msra.mxu0 0.0
      %804 = vmatprep.subr.mxu0 0.0
      %805 = vmatpush1.msra.mxu0 0.0
      %806 = vmatprep.subr.mxu0 0.0
      %807 = vmatpush1.msra.mxu0 0.0
      %808 = vmatprep.subr.mxu0 0.0
      %809 = vmatpush1.msra.mxu0 0.0
      %810 = vmatprep.subr.mxu0 0.0
      %811 = vmatpush1.msra.mxu0 0.0
      %812 = vmatprep.subr.mxu0 0.0
      %813 = vmatpush1.msra.mxu0 0.0
      %814 = vmatprep.mubr.f32.mxu0 0.0
      %v815 = vand.u32 %v124, 4294901760
      %v816 = vsub.f32 %v124, %v815
      %817 = vmatmul.mubr.f32.gmra.mrb[0].mxu0 %v816
      %v818 = vpop.f32.mrb[0].mxu0
      %v819 = vadd.f32 %v743, %v818
      %v820 = vpop.f32.mrb[0].mxu0
      %821 = vdwg.mxu0
      %822 = vmatprep.subr.mxu0 0.0
      %v823 = vand.u32 %v118, 4294901760
      %824 = vmatpush1.msra.mxu0 %v823
      %825 = vmatprep.subr.mxu0 0.0
      %v826 = vand.u32 %v119, 4294901760
      %827 = vmatpush1.msra.mxu0 %v826
      %828 = vmatprep.subr.mxu0 0.0
      %829 = vmatpush1.msra.mxu0 0.0
      %830 = vmatprep.subr.mxu0 0.0
      %831 = vmatpush1.msra.mxu0 0.0
      %832 = vmatprep.subr.mxu0 0.0
      %833 = vmatpush1.msra.mxu0 0.0
      %834 = vmatprep.subr.mxu0 0.0
      %835 = vmatpush1.msra.mxu0 0.0
      %836 = vmatprep.subr.mxu0 0.0
      %837 = vmatpush1.msra.mxu0 0.0
      %838 = vmatprep.subr.mxu0 0.0
      %839 = vmatpush1.msra.mxu0 0.0
      %840 = vmatprep.subr.mxu0 0.0
      %841 = vmatpush1.msra.mxu0 0.0
      %842 = vmatprep.subr.mxu0 0.0
      %843 = vmatpush1.msra.mxu0 0.0
      %844 = vmatprep.subr.mxu0 0.0
      %845 = vmatpush1.msra.mxu0 0.0
      %846 = vmatprep.subr.mxu0 0.0
      %847 = vmatpush1.msra.mxu0 0.0
      %848 = vmatprep.subr.mxu0 0.0
      %849 = vmatpush1.msra.mxu0 0.0
      %850 = vmatprep.subr.mxu0 0.0
      %851 = vmatpush1.msra.mxu0 0.0
      %852 = vmatprep.subr.mxu0 0.0
      %853 = vmatpush1.msra.mxu0 0.0
      %854 = vmatprep.subr.mxu0 0.0
      %855 = vmatpush1.msra.mxu0 0.0
      %856 = vmatprep.subr.mxu0 0.0
      %857 = vmatpush1.msra.mxu0 0.0
      %858 = vmatprep.subr.mxu0 0.0
      %859 = vmatpush1.msra.mxu0 0.0
      %860 = vmatprep.subr.mxu0 0.0
      %861 = vmatpush1.msra.mxu0 0.0
      %862 = vmatprep.subr.mxu0 0.0
      %863 = vmatpush1.msra.mxu0 0.0
      %864 = vmatprep.subr.mxu0 0.0
      %865 = vmatpush1.msra.mxu0 0.0
      %866 = vmatprep.subr.mxu0 0.0
      %867 = vmatpush1.msra.mxu0 0.0
      %868 = vmatprep.subr.mxu0 0.0
      %869 = vmatpush1.msra.mxu0 0.0
      %870 = vmatprep.subr.mxu0 0.0
      %871 = vmatpush1.msra.mxu0 0.0
      %872 = vmatprep.subr.mxu0 0.0
      %873 = vmatpush1.msra.mxu0 0.0
      %874 = vmatprep.subr.mxu0 0.0
      %875 = vmatpush1.msra.mxu0 0.0
      %876 = vmatprep.subr.mxu0 0.0
      %877 = vmatpush1.msra.mxu0 0.0
      %878 = vmatprep.subr.mxu0 0.0
      %879 = vmatpush1.msra.mxu0 0.0
      %880 = vmatprep.subr.mxu0 0.0
      %881 = vmatpush1.msra.mxu0 0.0
      %882 = vmatprep.subr.mxu0 0.0
      %883 = vmatpush1.msra.mxu0 0.0
      %884 = vmatprep.subr.mxu0 0.0
      %885 = vmatpush1.msra.mxu0 0.0
      %886 = vmatprep.subr.mxu0 0.0
      %887 = vmatpush1.msra.mxu0 0.0
      %888 = vmatprep.mubr.f32.mxu0 0.0
      %v889 = vand.u32 %v124, 4294901760
      %v890 = vsub.f32 %v124, %v889
      %v891 = vand.u32 %v890, 4294901760
      %892 = vmatmul.mubr.f32.gmra.mrb[0].mxu0 %v891
      %v893 = vpop.f32.mrb[0].mxu0
      %v894 = vadd.f32 %v819, %v893
      %v895 = vpop.f32.mrb[0].mxu0
      %896 = vdwg.mxu0
      %897 = vmatprep.subr.mxu0 0.0
      %v898 = vand.u32 %v118, 4294901760
      %v899 = vsub.f32 %v118, %v898
      %v900 = vand.u32 %v899, 4294901760
      %901 = vmatpush1.msra.mxu0 %v900
      %902 = vmatprep.subr.mxu0 0.0
      %v903 = vand.u32 %v119, 4294901760
      %v904 = vsub.f32 %v119, %v903
      %v905 = vand.u32 %v904, 4294901760
      %906 = vmatpush1.msra.mxu0 %v905
      %907 = vmatprep.subr.mxu0 0.0
      %908 = vmatpush1.msra.mxu0 0.0
      %909 = vmatprep.subr.mxu0 0.0
      %910 = vmatpush1.msra.mxu0 0.0
      %911 = vmatprep.subr.mxu0 0.0
      %912 = vmatpush1.msra.mxu0 0.0
      %913 = vmatprep.subr.mxu0 0.0
      %914 = vmatpush1.msra.mxu0 0.0
      %915 = vmatprep.subr.mxu0 0.0
      %916 = vmatpush1.msra.mxu0 0.0
      %917 = vmatprep.subr.mxu0 0.0
      %918 = vmatpush1.msra.mxu0 0.0
      %919 = vmatprep.subr.mxu0 0.0
      %920 = vmatpush1.msra.mxu0 0.0
      %921 = vmatprep.subr.mxu0 0.0
      %922 = vmatpush1.msra.mxu0 0.0
      %923 = vmatprep.subr.mxu0 0.0
      %924 = vmatpush1.msra.mxu0 0.0
      %925 = vmatprep.subr.mxu0 0.0
      %926 = vmatpush1.msra.mxu0 0.0
      %927 = vmatprep.subr.mxu0 0.0
      %928 = vmatpush1.msra.mxu0 0.0
      %929 = vmatprep.subr.mxu0 0.0
      %930 = vmatpush1.msra.mxu0 0.0
      %931 = vmatprep.subr.mxu0 0.0
      %932 = vmatpush1.msra.mxu0 0.0
      %933 = vmatprep.subr.mxu0 0.0
      %934 = vmatpush1.msra.mxu0 0.0
      %935 = vmatprep.subr.mxu0 0.0
      %936 = vmatpush1.msra.mxu0 0.0
      %937 = vmatprep.subr.mxu0 0.0
      %938 = vmatpush1.msra.mxu0 0.0
      %939 = vmatprep.subr.mxu0 0.0
      %940 = vmatpush1.msra.mxu0 0.0
      %941 = vmatprep.subr.mxu0 0.0
      %942 = vmatpush1.msra.mxu0 0.0
      %943 = vmatprep.subr.mxu0 0.0
      %944 = vmatpush1.msra.mxu0 0.0
      %945 = vmatprep.subr.mxu0 0.0
      %946 = vmatpush1.msra.mxu0 0.0
      %947 = vmatprep.subr.mxu0 0.0
      %948 = vmatpush1.msra.mxu0 0.0
      %949 = vmatprep.subr.mxu0 0.0
      %950 = vmatpush1.msra.mxu0 0.0
      %951 = vmatprep.subr.mxu0 0.0
      %952 = vmatpush1.msra.mxu0 0.0
      %953 = vmatprep.subr.mxu0 0.0
      %954 = vmatpush1.msra.mxu0 0.0
      %955 = vmatprep.subr.mxu0 0.0
      %956 = vmatpush1.msra.mxu0 0.0
      %957 = vmatprep.subr.mxu0 0.0
      %958 = vmatpush1.msra.mxu0 0.0
      %959 = vmatprep.subr.mxu0 0.0
      %960 = vmatpush1.msra.mxu0 0.0
      %961 = vmatprep.subr.mxu0 0.0
      %962 = vmatpush1.msra.mxu0 0.0
      %963 = vmatprep.subr.mxu0 0.0
      %964 = vmatpush1.msra.mxu0 0.0
      %965 = vmatprep.subr.mxu0 0.0
      %966 = vmatpush1.msra.mxu0 0.0
      %967 = vmatprep.mubr.f32.mxu0 0.0
      %v968 = vand.u32 %v124, 4294901760
      %969 = vmatmul.mubr.f32.gmra.mrb[0].mxu0 %v968
      %v970 = vpop.f32.mrb[0].mxu0
      %v971 = vadd.f32 %v894, %v970
      %v972 = vpop.f32.mrb[0].mxu0
      %973 = vdwg.mxu0
      %974 = vmatprep.subr.mxu0 0.0
      %v975 = vand.u32 %v118, 4294901760
      %976 = vmatpush1.msra.mxu0 %v975
      %977 = vmatprep.subr.mxu0 0.0
      %v978 = vand.u32 %v119, 4294901760
      %979 = vmatpush1.msra.mxu0 %v978
      %980 = vmatprep.subr.mxu0 0.0
      %981 = vmatpush1.msra.mxu0 0.0
      %982 = vmatprep.subr.mxu0 0.0
      %983 = vmatpush1.msra.mxu0 0.0
      %984 = vmatprep.subr.mxu0 0.0
      %985 = vmatpush1.msra.mxu0 0.0
      %986 = vmatprep.subr.mxu0 0.0
      %987 = vmatpush1.msra.mxu0 0.0
      %988 = vmatprep.subr.mxu0 0.0
      %989 = vmatpush1.msra.mxu0 0.0
      %990 = vmatprep.subr.mxu0 0.0
      %991 = vmatpush1.msra.mxu0 0.0
      %992 = vmatprep.subr.mxu0 0.0
      %993 = vmatpush1.msra.mxu0 0.0
      %994 = vmatprep.subr.mxu0 0.0
      %995 = vmatpush1.msra.mxu0 0.0
      %996 = vmatprep.subr.mxu0 0.0
      %997 = vmatpush1.msra.mxu0 0.0
      %998 = vmatprep.subr.mxu0 0.0
      %999 = vmatpush1.msra.mxu0 0.0
      %1000 = vmatprep.subr.mxu0 0.0
      %1001 = vmatpush1.msra.mxu0 0.0
      %1002 = vmatprep.subr.mxu0 0.0
      %1003 = vmatpush1.msra.mxu0 0.0
      %1004 = vmatprep.subr.mxu0 0.0
      %1005 = vmatpush1.msra.mxu0 0.0
      %1006 = vmatprep.subr.mxu0 0.0
      %1007 = vmatpush1.msra.mxu0 0.0
      %1008 = vmatprep.subr.mxu0 0.0
      %1009 = vmatpush1.msra.mxu0 0.0
      %1010 = vmatprep.subr.mxu0 0.0
      %1011 = vmatpush1.msra.mxu0 0.0
      %1012 = vmatprep.subr.mxu0 0.0
      %1013 = vmatpush1.msra.mxu0 0.0
      %1014 = vmatprep.subr.mxu0 0.0
      %1015 = vmatpush1.msra.mxu0 0.0
      %1016 = vmatprep.subr.mxu0 0.0
      %1017 = vmatpush1.msra.mxu0 0.0
      %1018 = vmatprep.subr.mxu0 0.0
      %1019 = vmatpush1.msra.mxu0 0.0
      %1020 = vmatprep.subr.mxu0 0.0
      %1021 = vmatpush1.msra.mxu0 0.0
      %1022 = vmatprep.subr.mxu0 0.0
      %1023 = vmatpush1.msra.mxu0 0.0
      %1024 = vmatprep.subr.mxu0 0.0
      %1025 = vmatpush1.msra.mxu0 0.0
      %1026 = vmatprep.subr.mxu0 0.0
      %1027 = vmatpush1.msra.mxu0 0.0
      %1028 = vmatprep.subr.mxu0 0.0
      %1029 = vmatpush1.msra.mxu0 0.0
      %1030 = vmatprep.subr.mxu0 0.0
      %1031 = vmatpush1.msra.mxu0 0.0
      %1032 = vmatprep.subr.mxu0 0.0
      %1033 = vmatpush1.msra.mxu0 0.0
      %1034 = vmatprep.subr.mxu0 0.0
      %1035 = vmatpush1.msra.mxu0 0.0
      %1036 = vmatprep.subr.mxu0 0.0
      %1037 = vmatpush1.msra.mxu0 0.0
      %1038 = vmatprep.subr.mxu0 0.0
      %1039 = vmatpush1.msra.mxu0 0.0
      %1040 = vmatprep.mubr.f32.mxu0 0.0
      %v1041 = vand.u32 %v124, 4294901760
      %1042 = vmatmul.mubr.f32.gmra.mrb[0].mxu0 %v1041
      %v1043 = vpop.f32.mrb[0].mxu0
      %v1044 = vadd.f32 %v971, %v1043
      %v1045 = vpop.f32.mrb[0].mxu0
      %1046 = vdwg.mxu0
      %v1047 = vadd.f32 %v587, %v1044
      %1048 = vst [vmem:[#allocation9] sm:$0xff] %v1047
    $region33: #{tpu_custom_call.1} parent=1 // pred_fallthru
      _
    %p1049 = scmp.gt.s32.totalorder %s85, 16
    // Predicated region
    $region34: #{tpu_custom_call.1} parent=1 // pred_check
      %p1050 = pneg %p1049
    $region35: #{tpu_custom_call.1} parent=1 // pred_check_branch
      %1052 = sbr.rel (%p1050) target = $region37
    $region36: #{tpu_custom_call.1} parent=1 // pred_region
      %s1053 = smul.u32 %s83, 16
      %v1054 = vlaneseq
      %v1055 = vshrl.u32 %v1054, 7
      %v1056 = vadd.s32 %v1055, 8
      %v1057 = vstv %s1053
      %v1058 = vadd.s32 %v1057, %v1055
      %v1059 = vadd.s32 %v1057, %v1056
      %vm1060 = vcmp.lt.s32.totalorder %v1058, 16
      %vm1061 = vcmp.lt.s32.totalorder %v1059, 16
      %v1062 = vld [vmem:[#allocation2] sm:$0xff]
      %v1063 = vld [vmem:[#allocation2 + $0x8] sm:$0xff]
      %v1064 = vld [vmem:[#allocation5] sm:$0xff]
      %v1065 = vld [vmem:[#allocation5 + $0x8] sm:$0xff]
      %vm1066 = vcmp.ne.f32.partialorder %v1064, 1.0
      %vm1067 = vcmp.ne.f32.partialorder %v1065, 1.0
      %vm1068 = vmand %vm1066, %vm1060
      %vm1069 = vmand %vm1067, %vm1061
      %v1070 = vmul.f32 %v1064, 2.0
      %v1071 = vmul.f32 %v1065, 2.0
      %v1072 = vsub.f32 %v1070, 1.0
      %v1073 = vsub.f32 %v1071, 1.0
      %v1074 = vsub.f32 %v1062, %v1072
      %v1075 = vsub.f32 %v1063, %v1073
      %v1076 = vand.u32 2147483647, %v1074
      %v1077 = vand.u32 2147483647, %v1075
      %vm1078 = vcmp.lt.f32.partialorder %v1076, 0.11111111
      %vm1079 = vcmp.lt.f32.partialorder %v1077, 0.11111111
      %v1080 = vmul.f32 %v1076, %v1076
      %v1081 = vmul.f32 %v1077, %v1077
      %v1082 = vmul.f32 %v1080, 4.5
      %v1083 = vmul.f32 %v1081, 4.5
      %v1084 = vsub.f32 %v1076, 0.055555556
      %v1085 = vsub.f32 %v1077, 0.055555556
      %v1086 = vsel %vm1078, %v1082, %v1084
      %v1087 = vsel %vm1079, %v1083, %v1085
      %v1088 = vsel %vm1068, %v1086, 0.0
      %v1089 = vsel %vm1069, %v1087, 0.0
      %v1090 = vsel %vm1068, 1, 0
      %v1091 = vsel %vm1069, 1, 0
      %v1092 = vcvt.s32.f32 %v1090
      %v1093 = vcvt.s32.f32 %v1091
      %v1094 = vld [vmem:[#allocation7] sm:$0xff]
      %v1095 = vld [vmem:[#allocation8] sm:$0xff]
      %vm1096 = vcmask 130048
      %v1098 = vsel %vm1096, %v1094, 0
      %1100 = vmatprep.subr.mxu0 0.0
      %v1101 = vand.u32 %v1088, 4294901760
      %1102 = vmatpush1.msra.mxu0 %v1101
      %1103 = vmatprep.subr.mxu0 0.0
      %v1104 = vand.u32 %v1089, 4294901760
      %1105 = vmatpush1.msra.mxu0 %v1104
      %1106 = vmatprep.subr.mxu0 0.0
      %1107 = vmatpush1.msra.mxu0 0.0
      %1108 = vmatprep.subr.mxu0 0.0
      %1109 = vmatpush1.msra.mxu0 0.0
      %1110 = vmatprep.subr.mxu0 0.0
      %1111 = vmatpush1.msra.mxu0 0.0
      %1112 = vmatprep.subr.mxu0 0.0
      %1113 = vmatpush1.msra.mxu0 0.0
      %1114 = vmatprep.subr.mxu0 0.0
      %1115 = vmatpush1.msra.mxu0 0.0
      %1116 = vmatprep.subr.mxu0 0.0
      %1117 = vmatpush1.msra.mxu0 0.0
      %1118 = vmatprep.subr.mxu0 0.0
      %1119 = vmatpush1.msra.mxu0 0.0
      %1120 = vmatprep.subr.mxu0 0.0
      %1121 = vmatpush1.msra.mxu0 0.0
      %1122 = vmatprep.subr.mxu0 0.0
      %1123 = vmatpush1.msra.mxu0 0.0
      %1124 = vmatprep.subr.mxu0 0.0
      %1125 = vmatpush1.msra.mxu0 0.0
      %1126 = vmatprep.subr.mxu0 0.0
      %1127 = vmatpush1.msra.mxu0 0.0
      %1128 = vmatprep.subr.mxu0 0.0
      %1129 = vmatpush1.msra.mxu0 0.0
      %1130 = vmatprep.subr.mxu0 0.0
      %1131 = vmatpush1.msra.mxu0 0.0
      %1132 = vmatprep.subr.mxu0 0.0
      %1133 = vmatpush1.msra.mxu0 0.0
      %1134 = vmatprep.subr.mxu0 0.0
      %1135 = vmatpush1.msra.mxu0 0.0
      %1136 = vmatprep.subr.mxu0 0.0
      %1137 = vmatpush1.msra.mxu0 0.0
      %1138 = vmatprep.subr.mxu0 0.0
      %1139 = vmatpush1.msra.mxu0 0.0
      %1140 = vmatprep.subr.mxu0 0.0
      %1141 = vmatpush1.msra.mxu0 0.0
      %1142 = vmatprep.subr.mxu0 0.0
      %1143 = vmatpush1.msra.mxu0 0.0
      %1144 = vmatprep.subr.mxu0 0.0
      %1145 = vmatpush1.msra.mxu0 0.0
      %1146 = vmatprep.subr.mxu0 0.0
      %1147 = vmatpush1.msra.mxu0 0.0
      %1148 = vmatprep.subr.mxu0 0.0
      %1149 = vmatpush1.msra.mxu0 0.0
      %1150 = vmatprep.subr.mxu0 0.0
      %1151 = vmatpush1.msra.mxu0 0.0
      %1152 = vmatprep.subr.mxu0 0.0
      %1153 = vmatpush1.msra.mxu0 0.0
      %1154 = vmatprep.subr.mxu0 0.0
      %1155 = vmatpush1.msra.mxu0 0.0
      %1156 = vmatprep.subr.mxu0 0.0
      %1157 = vmatpush1.msra.mxu0 0.0
      %1158 = vmatprep.subr.mxu0 0.0
      %1159 = vmatpush1.msra.mxu0 0.0
      %1160 = vmatprep.subr.mxu0 0.0
      %1161 = vmatpush1.msra.mxu0 0.0
      %1162 = vmatprep.subr.mxu0 0.0
      %1163 = vmatpush1.msra.mxu0 0.0
      %1164 = vmatprep.subr.mxu0 0.0
      %1165 = vmatpush1.msra.mxu0 0.0
      %1166 = vmatprep.mubr.f32.mxu0 0.0
      %v1167 = vand.u32 %v1098, 4294901760
      %v1168 = vsub.f32 %v1098, %v1167
      %v1169 = vand.u32 %v1168, 4294901760
      %v1170 = vsub.f32 %v1168, %v1169
      %v1171 = vand.u32 %v1170, 4294901760
      %1172 = vmatmul.mubr.f32.gmra.mrb[0].mxu0 %v1171
      %v1173 = vpop.f32.mrb[0].mxu0
      %v1174 = vadd.f32 0.0, %v1173
      %v1175 = vpop.f32.mrb[0].mxu0
      %1176 = vdwg.mxu0
      %1177 = vmatprep.subr.mxu0 0.0
      %v1178 = vand.u32 %v1088, 4294901760
      %v1179 = vsub.f32 %v1088, %v1178
      %v1180 = vand.u32 %v1179, 4294901760
      %v1181 = vsub.f32 %v1179, %v1180
      %v1182 = vand.u32 %v1181, 4294901760
      %1183 = vmatpush1.msra.mxu0 %v1182
      %1184 = vmatprep.subr.mxu0 0.0
      %v1185 = vand.u32 %v1089, 4294901760
      %v1186 = vsub.f32 %v1089, %v1185
      %v1187 = vand.u32 %v1186, 4294901760
      %v1188 = vsub.f32 %v1186, %v1187
      %v1189 = vand.u32 %v1188, 4294901760
      %1190 = vmatpush1.msra.mxu0 %v1189
      %1191 = vmatprep.subr.mxu0 0.0
      %1192 = vmatpush1.msra.mxu0 0.0
      %1193 = vmatprep.subr.mxu0 0.0
      %1194 = vmatpush1.msra.mxu0 0.0
      %1195 = vmatprep.subr.mxu0 0.0
      %1196 = vmatpush1.msra.mxu0 0.0
      %1197 = vmatprep.subr.mxu0 0.0
      %1198 = vmatpush1.msra.mxu0 0.0
      %1199 = vmatprep.subr.mxu0 0.0
      %1200 = vmatpush1.msra.mxu0 0.0
      %1201 = vmatprep.subr.mxu0 0.0
      %1202 = vmatpush1.msra.mxu0 0.0
      %1203 = vmatprep.subr.mxu0 0.0
      %1204 = vmatpush1.msra.mxu0 0.0
      %1205 = vmatprep.subr.mxu0 0.0
      %1206 = vmatpush1.msra.mxu0 0.0
      %1207 = vmatprep.subr.mxu0 0.0
      %1208 = vmatpush1.msra.mxu0 0.0
      %1209 = vmatprep.subr.mxu0 0.0
      %1210 = vmatpush1.msra.mxu0 0.0
      %1211 = vmatprep.subr.mxu0 0.0
      %1212 = vmatpush1.msra.mxu0 0.0
      %1213 = vmatprep.subr.mxu0 0.0
      %1214 = vmatpush1.msra.mxu0 0.0
      %1215 = vmatprep.subr.mxu0 0.0
      %1216 = vmatpush1.msra.mxu0 0.0
      %1217 = vmatprep.subr.mxu0 0.0
      %1218 = vmatpush1.msra.mxu0 0.0
      %1219 = vmatprep.subr.mxu0 0.0
      %1220 = vmatpush1.msra.mxu0 0.0
      %1221 = vmatprep.subr.mxu0 0.0
      %1222 = vmatpush1.msra.mxu0 0.0
      %1223 = vmatprep.subr.mxu0 0.0
      %1224 = vmatpush1.msra.mxu0 0.0
      %1225 = vmatprep.subr.mxu0 0.0
      %1226 = vmatpush1.msra.mxu0 0.0
      %1227 = vmatprep.subr.mxu0 0.0
      %1228 = vmatpush1.msra.mxu0 0.0
      %1229 = vmatprep.subr.mxu0 0.0
      %1230 = vmatpush1.msra.mxu0 0.0
      %1231 = vmatprep.subr.mxu0 0.0
      %1232 = vmatpush1.msra.mxu0 0.0
      %1233 = vmatprep.subr.mxu0 0.0
      %1234 = vmatpush1.msra.mxu0 0.0
      %1235 = vmatprep.subr.mxu0 0.0
      %1236 = vmatpush1.msra.mxu0 0.0
      %1237 = vmatprep.subr.mxu0 0.0
      %1238 = vmatpush1.msra.mxu0 0.0
      %1239 = vmatprep.subr.mxu0 0.0
      %1240 = vmatpush1.msra.mxu0 0.0
      %1241 = vmatprep.subr.mxu0 0.0
      %1242 = vmatpush1.msra.mxu0 0.0
      %1243 = vmatprep.subr.mxu0 0.0
      %1244 = vmatpush1.msra.mxu0 0.0
      %1245 = vmatprep.subr.mxu0 0.0
      %1246 = vmatpush1.msra.mxu0 0.0
      %1247 = vmatprep.subr.mxu0 0.0
      %1248 = vmatpush1.msra.mxu0 0.0
      %1249 = vmatprep.subr.mxu0 0.0
      %1250 = vmatpush1.msra.mxu0 0.0
      %1251 = vmatprep.mubr.f32.mxu0 0.0
      %v1252 = vand.u32 %v1098, 4294901760
      %1253 = vmatmul.mubr.f32.gmra.mrb[0].mxu0 %v1252
      %v1254 = vpop.f32.mrb[0].mxu0
      %v1255 = vadd.f32 %v1174, %v1254
      %v1256 = vpop.f32.mrb[0].mxu0
      %1257 = vdwg.mxu0
      %1258 = vmatprep.subr.mxu0 0.0
      %v1259 = vand.u32 %v1088, 4294901760
      %v1260 = vsub.f32 %v1088, %v1259
      %1261 = vmatpush1.msra.mxu0 %v1260
      %1262 = vmatprep.subr.mxu0 0.0
      %v1263 = vand.u32 %v1089, 4294901760
      %v1264 = vsub.f32 %v1089, %v1263
      %1265 = vmatpush1.msra.mxu0 %v1264
      %1266 = vmatprep.subr.mxu0 0.0
      %1267 = vmatpush1.msra.mxu0 0.0
      %1268 = vmatprep.subr.mxu0 0.0
      %1269 = vmatpush1.msra.mxu0 0.0
      %1270 = vmatprep.subr.mxu0 0.0
      %1271 = vmatpush1.msra.mxu0 0.0
      %1272 = vmatprep.subr.mxu0 0.0
      %1273 = vmatpush1.msra.mxu0 0.0
      %1274 = vmatprep.subr.mxu0 0.0
      %1275 = vmatpush1.msra.mxu0 0.0
      %1276 = vmatprep.subr.mxu0 0.0
      %1277 = vmatpush1.msra.mxu0 0.0
      %1278 = vmatprep.subr.mxu0 0.0
      %1279 = vmatpush1.msra.mxu0 0.0
      %1280 = vmatprep.subr.mxu0 0.0
      %1281 = vmatpush1.msra.mxu0 0.0
      %1282 = vmatprep.subr.mxu0 0.0
      %1283 = vmatpush1.msra.mxu0 0.0
      %1284 = vmatprep.subr.mxu0 0.0
      %1285 = vmatpush1.msra.mxu0 0.0
      %1286 = vmatprep.subr.mxu0 0.0
      %1287 = vmatpush1.msra.mxu0 0.0
      %1288 = vmatprep.subr.mxu0 0.0
      %1289 = vmatpush1.msra.mxu0 0.0
      %1290 = vmatprep.subr.mxu0 0.0
      %1291 = vmatpush1.msra.mxu0 0.0
      %1292 = vmatprep.subr.mxu0 0.0
      %1293 = vmatpush1.msra.mxu0 0.0
      %1294 = vmatprep.subr.mxu0 0.0
      %1295 = vmatpush1.msra.mxu0 0.0
      %1296 = vmatprep.subr.mxu0 0.0
      %1297 = vmatpush1.msra.mxu0 0.0
      %1298 = vmatprep.subr.mxu0 0.0
      %1299 = vmatpush1.msra.mxu0 0.0
      %1300 = vmatprep.subr.mxu0 0.0
      %1301 = vmatpush1.msra.mxu0 0.0
      %1302 = vmatprep.subr.mxu0 0.0
      %1303 = vmatpush1.msra.mxu0 0.0
      %1304 = vmatprep.subr.mxu0 0.0
      %1305 = vmatpush1.msra.mxu0 0.0
      %1306 = vmatprep.subr.mxu0 0.0
      %1307 = vmatpush1.msra.mxu0 0.0
      %1308 = vmatprep.subr.mxu0 0.0
      %1309 = vmatpush1.msra.mxu0 0.0
      %1310 = vmatprep.subr.mxu0 0.0
      %1311 = vmatpush1.msra.mxu0 0.0
      %1312 = vmatprep.subr.mxu0 0.0
      %1313 = vmatpush1.msra.mxu0 0.0
      %1314 = vmatprep.subr.mxu0 0.0
      %1315 = vmatpush1.msra.mxu0 0.0
      %1316 = vmatprep.subr.mxu0 0.0
      %1317 = vmatpush1.msra.mxu0 0.0
      %1318 = vmatprep.subr.mxu0 0.0
      %1319 = vmatpush1.msra.mxu0 0.0
      %1320 = vmatprep.subr.mxu0 0.0
      %1321 = vmatpush1.msra.mxu0 0.0
      %1322 = vmatprep.subr.mxu0 0.0
      %1323 = vmatpush1.msra.mxu0 0.0
      %1324 = vmatprep.subr.mxu0 0.0
      %1325 = vmatpush1.msra.mxu0 0.0
      %1326 = vmatprep.mubr.f32.mxu0 0.0
      %v1327 = vand.u32 %v1098, 4294901760
      %v1328 = vsub.f32 %v1098, %v1327
      %1329 = vmatmul.mubr.f32.gmra.mrb[0].mxu0 %v1328
      %v1330 = vpop.f32.mrb[0].mxu0
      %v1331 = vadd.f32 %v1255, %v1330
      %v1332 = vpop.f32.mrb[0].mxu0
      %1333 = vdwg.mxu0
      %1334 = vmatprep.subr.mxu0 0.0
      %v1335 = vand.u32 %v1088, 4294901760
      %1336 = vmatpush1.msra.mxu0 %v1335
      %1337 = vmatprep.subr.mxu0 0.0
      %v1338 = vand.u32 %v1089, 4294901760
      %1339 = vmatpush1.msra.mxu0 %v1338
      %1340 = vmatprep.subr.mxu0 0.0
      %1341 = vmatpush1.msra.mxu0 0.0
      %1342 = vmatprep.subr.mxu0 0.0
      %1343 = vmatpush1.msra.mxu0 0.0
      %1344 = vmatprep.subr.mxu0 0.0
      %1345 = vmatpush1.msra.mxu0 0.0
      %1346 = vmatprep.subr.mxu0 0.0
      %1347 = vmatpush1.msra.mxu0 0.0
      %1348 = vmatprep.subr.mxu0 0.0
      %1349 = vmatpush1.msra.mxu0 0.0
      %1350 = vmatprep.subr.mxu0 0.0
      %1351 = vmatpush1.msra.mxu0 0.0
      %1352 = vmatprep.subr.mxu0 0.0
      %1353 = vmatpush1.msra.mxu0 0.0
      %1354 = vmatprep.subr.mxu0 0.0
      %1355 = vmatpush1.msra.mxu0 0.0
      %1356 = vmatprep.subr.mxu0 0.0
      %1357 = vmatpush1.msra.mxu0 0.0
      %1358 = vmatprep.subr.mxu0 0.0
      %1359 = vmatpush1.msra.mxu0 0.0
      %1360 = vmatprep.subr.mxu0 0.0
      %1361 = vmatpush1.msra.mxu0 0.0
      %1362 = vmatprep.subr.mxu0 0.0
      %1363 = vmatpush1.msra.mxu0 0.0
      %1364 = vmatprep.subr.mxu0 0.0
      %1365 = vmatpush1.msra.mxu0 0.0
      %1366 = vmatprep.subr.mxu0 0.0
      %1367 = vmatpush1.msra.mxu0 0.0
      %1368 = vmatprep.subr.mxu0 0.0
      %1369 = vmatpush1.msra.mxu0 0.0
      %1370 = vmatprep.subr.mxu0 0.0
      %1371 = vmatpush1.msra.mxu0 0.0
      %1372 = vmatprep.subr.mxu0 0.0
      %1373 = vmatpush1.msra.mxu0 0.0
      %1374 = vmatprep.subr.mxu0 0.0
      %1375 = vmatpush1.msra.mxu0 0.0
      %1376 = vmatprep.subr.mxu0 0.0
      %1377 = vmatpush1.msra.mxu0 0.0
      %1378 = vmatprep.subr.mxu0 0.0
      %1379 = vmatpush1.msra.mxu0 0.0
      %1380 = vmatprep.subr.mxu0 0.0
      %1381 = vmatpush1.msra.mxu0 0.0
      %1382 = vmatprep.subr.mxu0 0.0
      %1383 = vmatpush1.msra.mxu0 0.0
      %1384 = vmatprep.subr.mxu0 0.0
      %1385 = vmatpush1.msra.mxu0 0.0
      %1386 = vmatprep.subr.mxu0 0.0
      %1387 = vmatpush1.msra.mxu0 0.0
      %1388 = vmatprep.subr.mxu0 0.0
      %1389 = vmatpush1.msra.mxu0 0.0
      %1390 = vmatprep.subr.mxu0 0.0
      %1391 = vmatpush1.msra.mxu0 0.0
      %1392 = vmatprep.subr.mxu0 0.0
      %1393 = vmatpush1.msra.mxu0 0.0
      %1394 = vmatprep.subr.mxu0 0.0
      %1395 = vmatpush1.msra.mxu0 0.0
      %1396 = vmatprep.subr.mxu0 0.0
      %1397 = vmatpush1.msra.mxu0 0.0
      %1398 = vmatprep.subr.mxu0 0.0
      %1399 = vmatpush1.msra.mxu0 0.0
      %1400 = vmatprep.mubr.f32.mxu0 0.0
      %v1401 = vand.u32 %v1098, 4294901760
      %v1402 = vsub.f32 %v1098, %v1401
      %v1403 = vand.u32 %v1402, 4294901760
      %1404 = vmatmul.mubr.f32.gmra.mrb[0].mxu0 %v1403
      %v1405 = vpop.f32.mrb[0].mxu0
      %v1406 = vadd.f32 %v1331, %v1405
      %v1407 = vpop.f32.mrb[0].mxu0
      %1408 = vdwg.mxu0
      %1409 = vmatprep.subr.mxu0 0.0
      %v1410 = vand.u32 %v1088, 4294901760
      %v1411 = vsub.f32 %v1088, %v1410
      %v1412 = vand.u32 %v1411, 4294901760
      %1413 = vmatpush1.msra.mxu0 %v1412
      %1414 = vmatprep.subr.mxu0 0.0
      %v1415 = vand.u32 %v1089, 4294901760
      %v1416 = vsub.f32 %v1089, %v1415
      %v1417 = vand.u32 %v1416, 4294901760
      %1418 = vmatpush1.msra.mxu0 %v1417
      %1419 = vmatprep.subr.mxu0 0.0
      %1420 = vmatpush1.msra.mxu0 0.0
      %1421 = vmatprep.subr.mxu0 0.0
      %1422 = vmatpush1.msra.mxu0 0.0
      %1423 = vmatprep.subr.mxu0 0.0
      %1424 = vmatpush1.msra.mxu0 0.0
      %1425 = vmatprep.subr.mxu0 0.0
      %1426 = vmatpush1.msra.mxu0 0.0
      %1427 = vmatprep.subr.mxu0 0.0
      %1428 = vmatpush1.msra.mxu0 0.0
      %1429 = vmatprep.subr.mxu0 0.0
      %1430 = vmatpush1.msra.mxu0 0.0
      %1431 = vmatprep.subr.mxu0 0.0
      %1432 = vmatpush1.msra.mxu0 0.0
      %1433 = vmatprep.subr.mxu0 0.0
      %1434 = vmatpush1.msra.mxu0 0.0
      %1435 = vmatprep.subr.mxu0 0.0
      %1436 = vmatpush1.msra.mxu0 0.0
      %1437 = vmatprep.subr.mxu0 0.0
      %1438 = vmatpush1.msra.mxu0 0.0
      %1439 = vmatprep.subr.mxu0 0.0
      %1440 = vmatpush1.msra.mxu0 0.0
      %1441 = vmatprep.subr.mxu0 0.0
      %1442 = vmatpush1.msra.mxu0 0.0
      %1443 = vmatprep.subr.mxu0 0.0
      %1444 = vmatpush1.msra.mxu0 0.0
      %1445 = vmatprep.subr.mxu0 0.0
      %1446 = vmatpush1.msra.mxu0 0.0
      %1447 = vmatprep.subr.mxu0 0.0
      %1448 = vmatpush1.msra.mxu0 0.0
      %1449 = vmatprep.subr.mxu0 0.0
      %1450 = vmatpush1.msra.mxu0 0.0
      %1451 = vmatprep.subr.mxu0 0.0
      %1452 = vmatpush1.msra.mxu0 0.0
      %1453 = vmatprep.subr.mxu0 0.0
      %1454 = vmatpush1.msra.mxu0 0.0
      %1455 = vmatprep.subr.mxu0 0.0
      %1456 = vmatpush1.msra.mxu0 0.0
      %1457 = vmatprep.subr.mxu0 0.0
      %1458 = vmatpush1.msra.mxu0 0.0
      %1459 = vmatprep.subr.mxu0 0.0
      %1460 = vmatpush1.msra.mxu0 0.0
      %1461 = vmatprep.subr.mxu0 0.0
      %1462 = vmatpush1.msra.mxu0 0.0
      %1463 = vmatprep.subr.mxu0 0.0
      %1464 = vmatpush1.msra.mxu0 0.0
      %1465 = vmatprep.subr.mxu0 0.0
      %1466 = vmatpush1.msra.mxu0 0.0
      %1467 = vmatprep.subr.mxu0 0.0
      %1468 = vmatpush1.msra.mxu0 0.0
      %1469 = vmatprep.subr.mxu0 0.0
      %1470 = vmatpush1.msra.mxu0 0.0
      %1471 = vmatprep.subr.mxu0 0.0
      %1472 = vmatpush1.msra.mxu0 0.0
      %1473 = vmatprep.subr.mxu0 0.0
      %1474 = vmatpush1.msra.mxu0 0.0
      %1475 = vmatprep.subr.mxu0 0.0
      %1476 = vmatpush1.msra.mxu0 0.0
      %1477 = vmatprep.subr.mxu0 0.0
      %1478 = vmatpush1.msra.mxu0 0.0
      %1479 = vmatprep.mubr.f32.mxu0 0.0
      %v1480 = vand.u32 %v1098, 4294901760
      %1481 = vmatmul.mubr.f32.gmra.mrb[0].mxu0 %v1480
      %v1482 = vpop.f32.mrb[0].mxu0
      %v1483 = vadd.f32 %v1406, %v1482
      %v1484 = vpop.f32.mrb[0].mxu0
      %1485 = vdwg.mxu0
      %1486 = vmatprep.subr.mxu0 0.0
      %v1487 = vand.u32 %v1088, 4294901760
      %1488 = vmatpush1.msra.mxu0 %v1487
      %1489 = vmatprep.subr.mxu0 0.0
      %v1490 = vand.u32 %v1089, 4294901760
      %1491 = vmatpush1.msra.mxu0 %v1490
      %1492 = vmatprep.subr.mxu0 0.0
      %1493 = vmatpush1.msra.mxu0 0.0
      %1494 = vmatprep.subr.mxu0 0.0
      %1495 = vmatpush1.msra.mxu0 0.0
      %1496 = vmatprep.subr.mxu0 0.0
      %1497 = vmatpush1.msra.mxu0 0.0
      %1498 = vmatprep.subr.mxu0 0.0
      %1499 = vmatpush1.msra.mxu0 0.0
      %1500 = vmatprep.subr.mxu0 0.0
      %1501 = vmatpush1.msra.mxu0 0.0
      %1502 = vmatprep.subr.mxu0 0.0
      %1503 = vmatpush1.msra.mxu0 0.0
      %1504 = vmatprep.subr.mxu0 0.0
      %1505 = vmatpush1.msra.mxu0 0.0
      %1506 = vmatprep.subr.mxu0 0.0
      %1507 = vmatpush1.msra.mxu0 0.0
      %1508 = vmatprep.subr.mxu0 0.0
      %1509 = vmatpush1.msra.mxu0 0.0
      %1510 = vmatprep.subr.mxu0 0.0
      %1511 = vmatpush1.msra.mxu0 0.0
      %1512 = vmatprep.subr.mxu0 0.0
      %1513 = vmatpush1.msra.mxu0 0.0
      %1514 = vmatprep.subr.mxu0 0.0
      %1515 = vmatpush1.msra.mxu0 0.0
      %1516 = vmatprep.subr.mxu0 0.0
      %1517 = vmatpush1.msra.mxu0 0.0
      %1518 = vmatprep.subr.mxu0 0.0
      %1519 = vmatpush1.msra.mxu0 0.0
      %1520 = vmatprep.subr.mxu0 0.0
      %1521 = vmatpush1.msra.mxu0 0.0
      %1522 = vmatprep.subr.mxu0 0.0
      %1523 = vmatpush1.msra.mxu0 0.0
      %1524 = vmatprep.subr.mxu0 0.0
      %1525 = vmatpush1.msra.mxu0 0.0
      %1526 = vmatprep.subr.mxu0 0.0
      %1527 = vmatpush1.msra.mxu0 0.0
      %1528 = vmatprep.subr.mxu0 0.0
      %1529 = vmatpush1.msra.mxu0 0.0
      %1530 = vmatprep.subr.mxu0 0.0
      %1531 = vmatpush1.msra.mxu0 0.0
      %1532 = vmatprep.subr.mxu0 0.0
      %1533 = vmatpush1.msra.mxu0 0.0
      %1534 = vmatprep.subr.mxu0 0.0
      %1535 = vmatpush1.msra.mxu0 0.0
      %1536 = vmatprep.subr.mxu0 0.0
      %1537 = vmatpush1.msra.mxu0 0.0
      %1538 = vmatprep.subr.mxu0 0.0
      %1539 = vmatpush1.msra.mxu0 0.0
      %1540 = vmatprep.subr.mxu0 0.0
      %1541 = vmatpush1.msra.mxu0 0.0
      %1542 = vmatprep.subr.mxu0 0.0
      %1543 = vmatpush1.msra.mxu0 0.0
      %1544 = vmatprep.subr.mxu0 0.0
      %1545 = vmatpush1.msra.mxu0 0.0
      %1546 = vmatprep.subr.mxu0 0.0
      %1547 = vmatpush1.msra.mxu0 0.0
      %1548 = vmatprep.subr.mxu0 0.0
      %1549 = vmatpush1.msra.mxu0 0.0
      %1550 = vmatprep.subr.mxu0 0.0
      %1551 = vmatpush1.msra.mxu0 0.0
      %1552 = vmatprep.mubr.f32.mxu0 0.0
      %v1553 = vand.u32 %v1098, 4294901760
      %1554 = vmatmul.mubr.f32.gmra.mrb[0].mxu0 %v1553
      %v1555 = vpop.f32.mrb[0].mxu0
      %v1556 = vadd.f32 %v1483, %v1555
      %v1557 = vpop.f32.mrb[0].mxu0
      %1558 = vdwg.mxu0
      %v1559 = vadd.f32 %v1095, %v1556
      %1560 = vst [vmem:[#allocation8] sm:$0xff] %v1559
      %v1561 = vld [vmem:[#allocation9] sm:$0xff]
      %1562 = vmatprep.subr.mxu0 0.0
      %v1563 = vand.u32 %v1092, 4294901760
      %1564 = vmatpush1.msra.mxu0 %v1563
      %1565 = vmatprep.subr.mxu0 0.0
      %v1566 = vand.u32 %v1093, 4294901760
      %1567 = vmatpush1.msra.mxu0 %v1566
      %1568 = vmatprep.subr.mxu0 0.0
      %1569 = vmatpush1.msra.mxu0 0.0
      %1570 = vmatprep.subr.mxu0 0.0
      %1571 = vmatpush1.msra.mxu0 0.0
      %1572 = vmatprep.subr.mxu0 0.0
      %1573 = vmatpush1.msra.mxu0 0.0
      %1574 = vmatprep.subr.mxu0 0.0
      %1575 = vmatpush1.msra.mxu0 0.0
      %1576 = vmatprep.subr.mxu0 0.0
      %1577 = vmatpush1.msra.mxu0 0.0
      %1578 = vmatprep.subr.mxu0 0.0
      %1579 = vmatpush1.msra.mxu0 0.0
      %1580 = vmatprep.subr.mxu0 0.0
      %1581 = vmatpush1.msra.mxu0 0.0
      %1582 = vmatprep.subr.mxu0 0.0
      %1583 = vmatpush1.msra.mxu0 0.0
      %1584 = vmatprep.subr.mxu0 0.0
      %1585 = vmatpush1.msra.mxu0 0.0
      %1586 = vmatprep.subr.mxu0 0.0
      %1587 = vmatpush1.msra.mxu0 0.0
      %1588 = vmatprep.subr.mxu0 0.0
      %1589 = vmatpush1.msra.mxu0 0.0
      %1590 = vmatprep.subr.mxu0 0.0
      %1591 = vmatpush1.msra.mxu0 0.0
      %1592 = vmatprep.subr.mxu0 0.0
      %1593 = vmatpush1.msra.mxu0 0.0
      %1594 = vmatprep.subr.mxu0 0.0
      %1595 = vmatpush1.msra.mxu0 0.0
      %1596 = vmatprep.subr.mxu0 0.0
      %1597 = vmatpush1.msra.mxu0 0.0
      %1598 = vmatprep.subr.mxu0 0.0
      %1599 = vmatpush1.msra.mxu0 0.0
      %1600 = vmatprep.subr.mxu0 0.0
      %1601 = vmatpush1.msra.mxu0 0.0
      %1602 = vmatprep.subr.mxu0 0.0
      %1603 = vmatpush1.msra.mxu0 0.0
      %1604 = vmatprep.subr.mxu0 0.0
      %1605 = vmatpush1.msra.mxu0 0.0
      %1606 = vmatprep.subr.mxu0 0.0
      %1607 = vmatpush1.msra.mxu0 0.0
      %1608 = vmatprep.subr.mxu0 0.0
      %1609 = vmatpush1.msra.mxu0 0.0
      %1610 = vmatprep.subr.mxu0 0.0
      %1611 = vmatpush1.msra.mxu0 0.0
      %1612 = vmatprep.subr.mxu0 0.0
      %1613 = vmatpush1.msra.mxu0 0.0
      %1614 = vmatprep.subr.mxu0 0.0
      %1615 = vmatpush1.msra.mxu0 0.0
      %1616 = vmatprep.subr.mxu0 0.0
      %1617 = vmatpush1.msra.mxu0 0.0
      %1618 = vmatprep.subr.mxu0 0.0
      %1619 = vmatpush1.msra.mxu0 0.0
      %1620 = vmatprep.subr.mxu0 0.0
      %1621 = vmatpush1.msra.mxu0 0.0
      %1622 = vmatprep.subr.mxu0 0.0
      %1623 = vmatpush1.msra.mxu0 0.0
      %1624 = vmatprep.subr.mxu0 0.0
      %1625 = vmatpush1.msra.mxu0 0.0
      %1626 = vmatprep.subr.mxu0 0.0
      %1627 = vmatpush1.msra.mxu0 0.0
      %1628 = vmatprep.mubr.f32.mxu0 0.0
      %v1629 = vand.u32 %v1098, 4294901760
      %v1630 = vsub.f32 %v1098, %v1629
      %v1631 = vand.u32 %v1630, 4294901760
      %v1632 = vsub.f32 %v1630, %v1631
      %v1633 = vand.u32 %v1632, 4294901760
      %1634 = vmatmul.mubr.f32.gmra.mrb[0].mxu0 %v1633
      %v1635 = vpop.f32.mrb[0].mxu0
      %v1636 = vadd.f32 0.0, %v1635
      %v1637 = vpop.f32.mrb[0].mxu0
      %1638 = vdwg.mxu0
      %1639 = vmatprep.subr.mxu0 0.0
      %v1640 = vand.u32 %v1092, 4294901760
      %v1641 = vsub.f32 %v1092, %v1640
      %v1642 = vand.u32 %v1641, 4294901760
      %v1643 = vsub.f32 %v1641, %v1642
      %v1644 = vand.u32 %v1643, 4294901760
      %1645 = vmatpush1.msra.mxu0 %v1644
      %1646 = vmatprep.subr.mxu0 0.0
      %v1647 = vand.u32 %v1093, 4294901760
      %v1648 = vsub.f32 %v1093, %v1647
      %v1649 = vand.u32 %v1648, 4294901760
      %v1650 = vsub.f32 %v1648, %v1649
      %v1651 = vand.u32 %v1650, 4294901760
      %1652 = vmatpush1.msra.mxu0 %v1651
      %1653 = vmatprep.subr.mxu0 0.0
      %1654 = vmatpush1.msra.mxu0 0.0
      %1655 = vmatprep.subr.mxu0 0.0
      %1656 = vmatpush1.msra.mxu0 0.0
      %1657 = vmatprep.subr.mxu0 0.0
      %1658 = vmatpush1.msra.mxu0 0.0
      %1659 = vmatprep.subr.mxu0 0.0
      %1660 = vmatpush1.msra.mxu0 0.0
      %1661 = vmatprep.subr.mxu0 0.0
      %1662 = vmatpush1.msra.mxu0 0.0
      %1663 = vmatprep.subr.mxu0 0.0
      %1664 = vmatpush1.msra.mxu0 0.0
      %1665 = vmatprep.subr.mxu0 0.0
      %1666 = vmatpush1.msra.mxu0 0.0
      %1667 = vmatprep.subr.mxu0 0.0
      %1668 = vmatpush1.msra.mxu0 0.0
      %1669 = vmatprep.subr.mxu0 0.0
      %1670 = vmatpush1.msra.mxu0 0.0
      %1671 = vmatprep.subr.mxu0 0.0
      %1672 = vmatpush1.msra.mxu0 0.0
      %1673 = vmatprep.subr.mxu0 0.0
      %1674 = vmatpush1.msra.mxu0 0.0
      %1675 = vmatprep.subr.mxu0 0.0
      %1676 = vmatpush1.msra.mxu0 0.0
      %1677 = vmatprep.subr.mxu0 0.0
      %1678 = vmatpush1.msra.mxu0 0.0
      %1679 = vmatprep.subr.mxu0 0.0
      %1680 = vmatpush1.msra.mxu0 0.0
      %1681 = vmatprep.subr.mxu0 0.0
      %1682 = vmatpush1.msra.mxu0 0.0
      %1683 = vmatprep.subr.mxu0 0.0
      %1684 = vmatpush1.msra.mxu0 0.0
      %1685 = vmatprep.subr.mxu0 0.0
      %1686 = vmatpush1.msra.mxu0 0.0
      %1687 = vmatprep.subr.mxu0 0.0
      %1688 = vmatpush1.msra.mxu0 0.0
      %1689 = vmatprep.subr.mxu0 0.0
      %1690 = vmatpush1.msra.mxu0 0.0
      %1691 = vmatprep.subr.mxu0 0.0
      %1692 = vmatpush1.msra.mxu0 0.0
      %1693 = vmatprep.subr.mxu0 0.0
      %1694 = vmatpush1.msra.mxu0 0.0
      %1695 = vmatprep.subr.mxu0 0.0
      %1696 = vmatpush1.msra.mxu0 0.0
      %1697 = vmatprep.subr.mxu0 0.0
      %1698 = vmatpush1.msra.mxu0 0.0
      %1699 = vmatprep.subr.mxu0 0.0
      %1700 = vmatpush1.msra.mxu0 0.0
      %1701 = vmatprep.subr.mxu0 0.0
      %1702 = vmatpush1.msra.mxu0 0.0
      %1703 = vmatprep.subr.mxu0 0.0
      %1704 = vmatpush1.msra.mxu0 0.0
      %1705 = vmatprep.subr.mxu0 0.0
      %1706 = vmatpush1.msra.mxu0 0.0
      %1707 = vmatprep.subr.mxu0 0.0
      %1708 = vmatpush1.msra.mxu0 0.0
      %1709 = vmatprep.subr.mxu0 0.0
      %1710 = vmatpush1.msra.mxu0 0.0
      %1711 = vmatprep.subr.mxu0 0.0
      %1712 = vmatpush1.msra.mxu0 0.0
      %1713 = vmatprep.mubr.f32.mxu0 0.0
      %v1714 = vand.u32 %v1098, 4294901760
      %1715 = vmatmul.mubr.f32.gmra.mrb[0].mxu0 %v1714
      %v1716 = vpop.f32.mrb[0].mxu0
      %v1717 = vadd.f32 %v1636, %v1716
      %v1718 = vpop.f32.mrb[0].mxu0
      %1719 = vdwg.mxu0
      %1720 = vmatprep.subr.mxu0 0.0
      %v1721 = vand.u32 %v1092, 4294901760
      %v1722 = vsub.f32 %v1092, %v1721
      %1723 = vmatpush1.msra.mxu0 %v1722
      %1724 = vmatprep.subr.mxu0 0.0
      %v1725 = vand.u32 %v1093, 4294901760
      %v1726 = vsub.f32 %v1093, %v1725
      %1727 = vmatpush1.msra.mxu0 %v1726
      %1728 = vmatprep.subr.mxu0 0.0
      %1729 = vmatpush1.msra.mxu0 0.0
      %1730 = vmatprep.subr.mxu0 0.0
      %1731 = vmatpush1.msra.mxu0 0.0
      %1732 = vmatprep.subr.mxu0 0.0
      %1733 = vmatpush1.msra.mxu0 0.0
      %1734 = vmatprep.subr.mxu0 0.0
      %1735 = vmatpush1.msra.mxu0 0.0
      %1736 = vmatprep.subr.mxu0 0.0
      %1737 = vmatpush1.msra.mxu0 0.0
      %1738 = vmatprep.subr.mxu0 0.0
      %1739 = vmatpush1.msra.mxu0 0.0
      %1740 = vmatprep.subr.mxu0 0.0
      %1741 = vmatpush1.msra.mxu0 0.0
      %1742 = vmatprep.subr.mxu0 0.0
      %1743 = vmatpush1.msra.mxu0 0.0
      %1744 = vmatprep.subr.mxu0 0.0
      %1745 = vmatpush1.msra.mxu0 0.0
      %1746 = vmatprep.subr.mxu0 0.0
      %1747 = vmatpush1.msra.mxu0 0.0
      %1748 = vmatprep.subr.mxu0 0.0
      %1749 = vmatpush1.msra.mxu0 0.0
      %1750 = vmatprep.subr.mxu0 0.0
      %1751 = vmatpush1.msra.mxu0 0.0
      %1752 = vmatprep.subr.mxu0 0.0
      %1753 = vmatpush1.msra.mxu0 0.0
      %1754 = vmatprep.subr.mxu0 0.0
      %1755 = vmatpush1.msra.mxu0 0.0
      %1756 = vmatprep.subr.mxu0 0.0
      %1757 = vmatpush1.msra.mxu0 0.0
      %1758 = vmatprep.subr.mxu0 0.0
      %1759 = vmatpush1.msra.mxu0 0.0
      %1760 = vmatprep.subr.mxu0 0.0
      %1761 = vmatpush1.msra.mxu0 0.0
      %1762 = vmatprep.subr.mxu0 0.0
      %1763 = vmatpush1.msra.mxu0 0.0
      %1764 = vmatprep.subr.mxu0 0.0
      %1765 = vmatpush1.msra.mxu0 0.0
      %1766 = vmatprep.subr.mxu0 0.0
      %1767 = vmatpush1.msra.mxu0 0.0
      %1768 = vmatprep.subr.mxu0 0.0
      %1769 = vmatpush1.msra.mxu0 0.0
      %1770 = vmatprep.subr.mxu0 0.0
      %1771 = vmatpush1.msra.mxu0 0.0
      %1772 = vmatprep.subr.mxu0 0.0
      %1773 = vmatpush1.msra.mxu0 0.0
      %1774 = vmatprep.subr.mxu0 0.0
      %1775 = vmatpush1.msra.mxu0 0.0
      %1776 = vmatprep.subr.mxu0 0.0
      %1777 = vmatpush1.msra.mxu0 0.0
      %1778 = vmatprep.subr.mxu0 0.0
      %1779 = vmatpush1.msra.mxu0 0.0
      %1780 = vmatprep.subr.mxu0 0.0
      %1781 = vmatpush1.msra.mxu0 0.0
      %1782 = vmatprep.subr.mxu0 0.0
      %1783 = vmatpush1.msra.mxu0 0.0
      %1784 = vmatprep.subr.mxu0 0.0
      %1785 = vmatpush1.msra.mxu0 0.0
      %1786 = vmatprep.subr.mxu0 0.0
      %1787 = vmatpush1.msra.mxu0 0.0
      %1788 = vmatprep.mubr.f32.mxu0 0.0
      %v1789 = vand.u32 %v1098, 4294901760
      %v1790 = vsub.f32 %v1098, %v1789
      %1791 = vmatmul.mubr.f32.gmra.mrb[0].mxu0 %v1790
      %v1792 = vpop.f32.mrb[0].mxu0
      %v1793 = vadd.f32 %v1717, %v1792
      %v1794 = vpop.f32.mrb[0].mxu0
      %1795 = vdwg.mxu0
      %1796 = vmatprep.subr.mxu0 0.0
      %v1797 = vand.u32 %v1092, 4294901760
      %1798 = vmatpush1.msra.mxu0 %v1797
      %1799 = vmatprep.subr.mxu0 0.0
      %v1800 = vand.u32 %v1093, 4294901760
      %1801 = vmatpush1.msra.mxu0 %v1800
      %1802 = vmatprep.subr.mxu0 0.0
      %1803 = vmatpush1.msra.mxu0 0.0
      %1804 = vmatprep.subr.mxu0 0.0
      %1805 = vmatpush1.msra.mxu0 0.0
      %1806 = vmatprep.subr.mxu0 0.0
      %1807 = vmatpush1.msra.mxu0 0.0
      %1808 = vmatprep.subr.mxu0 0.0
      %1809 = vmatpush1.msra.mxu0 0.0
      %1810 = vmatprep.subr.mxu0 0.0
      %1811 = vmatpush1.msra.mxu0 0.0
      %1812 = vmatprep.subr.mxu0 0.0
      %1813 = vmatpush1.msra.mxu0 0.0
      %1814 = vmatprep.subr.mxu0 0.0
      %1815 = vmatpush1.msra.mxu0 0.0
      %1816 = vmatprep.subr.mxu0 0.0
      %1817 = vmatpush1.msra.mxu0 0.0
      %1818 = vmatprep.subr.mxu0 0.0
      %1819 = vmatpush1.msra.mxu0 0.0
      %1820 = vmatprep.subr.mxu0 0.0
      %1821 = vmatpush1.msra.mxu0 0.0
      %1822 = vmatprep.subr.mxu0 0.0
      %1823 = vmatpush1.msra.mxu0 0.0
      %1824 = vmatprep.subr.mxu0 0.0
      %1825 = vmatpush1.msra.mxu0 0.0
      %1826 = vmatprep.subr.mxu0 0.0
      %1827 = vmatpush1.msra.mxu0 0.0
      %1828 = vmatprep.subr.mxu0 0.0
      %1829 = vmatpush1.msra.mxu0 0.0
      %1830 = vmatprep.subr.mxu0 0.0
      %1831 = vmatpush1.msra.mxu0 0.0
      %1832 = vmatprep.subr.mxu0 0.0
      %1833 = vmatpush1.msra.mxu0 0.0
      %1834 = vmatprep.subr.mxu0 0.0
      %1835 = vmatpush1.msra.mxu0 0.0
      %1836 = vmatprep.subr.mxu0 0.0
      %1837 = vmatpush1.msra.mxu0 0.0
      %1838 = vmatprep.subr.mxu0 0.0
      %1839 = vmatpush1.msra.mxu0 0.0
      %1840 = vmatprep.subr.mxu0 0.0
      %1841 = vmatpush1.msra.mxu0 0.0
      %1842 = vmatprep.subr.mxu0 0.0
      %1843 = vmatpush1.msra.mxu0 0.0
      %1844 = vmatprep.subr.mxu0 0.0
      %1845 = vmatpush1.msra.mxu0 0.0
      %1846 = vmatprep.subr.mxu0 0.0
      %1847 = vmatpush1.msra.mxu0 0.0
      %1848 = vmatprep.subr.mxu0 0.0
      %1849 = vmatpush1.msra.mxu0 0.0
      %1850 = vmatprep.subr.mxu0 0.0
      %1851 = vmatpush1.msra.mxu0 0.0
      %1852 = vmatprep.subr.mxu0 0.0
      %1853 = vmatpush1.msra.mxu0 0.0
      %1854 = vmatprep.subr.mxu0 0.0
      %1855 = vmatpush1.msra.mxu0 0.0
      %1856 = vmatprep.subr.mxu0 0.0
      %1857 = vmatpush1.msra.mxu0 0.0
      %1858 = vmatprep.subr.mxu0 0.0
      %1859 = vmatpush1.msra.mxu0 0.0
      %1860 = vmatprep.subr.mxu0 0.0
      %1861 = vmatpush1.msra.mxu0 0.0
      %1862 = vmatprep.mubr.f32.mxu0 0.0
      %v1863 = vand.u32 %v1098, 4294901760
      %v1864 = vsub.f32 %v1098, %v1863
      %v1865 = vand.u32 %v1864, 4294901760
      %1866 = vmatmul.mubr.f32.gmra.mrb[0].mxu0 %v1865
      %v1867 = vpop.f32.mrb[0].mxu0
      %v1868 = vadd.f32 %v1793, %v1867
      %v1869 = vpop.f32.mrb[0].mxu0
      %1870 = vdwg.mxu0
      %1871 = vmatprep.subr.mxu0 0.0
      %v1872 = vand.u32 %v1092, 4294901760
      %v1873 = vsub.f32 %v1092, %v1872
      %v1874 = vand.u32 %v1873, 4294901760
      %1875 = vmatpush1.msra.mxu0 %v1874
      %1876 = vmatprep.subr.mxu0 0.0
      %v1877 = vand.u32 %v1093, 4294901760
      %v1878 = vsub.f32 %v1093, %v1877
      %v1879 = vand.u32 %v1878, 4294901760
      %1880 = vmatpush1.msra.mxu0 %v1879
      %1881 = vmatprep.subr.mxu0 0.0
      %1882 = vmatpush1.msra.mxu0 0.0
      %1883 = vmatprep.subr.mxu0 0.0
      %1884 = vmatpush1.msra.mxu0 0.0
      %1885 = vmatprep.subr.mxu0 0.0
      %1886 = vmatpush1.msra.mxu0 0.0
      %1887 = vmatprep.subr.mxu0 0.0
      %1888 = vmatpush1.msra.mxu0 0.0
      %1889 = vmatprep.subr.mxu0 0.0
      %1890 = vmatpush1.msra.mxu0 0.0
      %1891 = vmatprep.subr.mxu0 0.0
      %1892 = vmatpush1.msra.mxu0 0.0
      %1893 = vmatprep.subr.mxu0 0.0
      %1894 = vmatpush1.msra.mxu0 0.0
      %1895 = vmatprep.subr.mxu0 0.0
      %1896 = vmatpush1.msra.mxu0 0.0
      %1897 = vmatprep.subr.mxu0 0.0
      %1898 = vmatpush1.msra.mxu0 0.0
      %1899 = vmatprep.subr.mxu0 0.0
      %1900 = vmatpush1.msra.mxu0 0.0
      %1901 = vmatprep.subr.mxu0 0.0
      %1902 = vmatpush1.msra.mxu0 0.0
      %1903 = vmatprep.subr.mxu0 0.0
      %1904 = vmatpush1.msra.mxu0 0.0
      %1905 = vmatprep.subr.mxu0 0.0
      %1906 = vmatpush1.msra.mxu0 0.0
      %1907 = vmatprep.subr.mxu0 0.0
      %1908 = vmatpush1.msra.mxu0 0.0
      %1909 = vmatprep.subr.mxu0 0.0
      %1910 = vmatpush1.msra.mxu0 0.0
      %1911 = vmatprep.subr.mxu0 0.0
      %1912 = vmatpush1.msra.mxu0 0.0
      %1913 = vmatprep.subr.mxu0 0.0
      %1914 = vmatpush1.msra.mxu0 0.0
      %1915 = vmatprep.subr.mxu0 0.0
      %1916 = vmatpush1.msra.mxu0 0.0
      %1917 = vmatprep.subr.mxu0 0.0
      %1918 = vmatpush1.msra.mxu0 0.0
      %1919 = vmatprep.subr.mxu0 0.0
      %1920 = vmatpush1.msra.mxu0 0.0
      %1921 = vmatprep.subr.mxu0 0.0
      %1922 = vmatpush1.msra.mxu0 0.0
      %1923 = vmatprep.subr.mxu0 0.0
      %1924 = vmatpush1.msra.mxu0 0.0
      %1925 = vmatprep.subr.mxu0 0.0
      %1926 = vmatpush1.msra.mxu0 0.0
      %1927 = vmatprep.subr.mxu0 0.0
      %1928 = vmatpush1.msra.mxu0 0.0
      %1929 = vmatprep.subr.mxu0 0.0
      %1930 = vmatpush1.msra.mxu0 0.0
      %1931 = vmatprep.subr.mxu0 0.0
      %1932 = vmatpush1.msra.mxu0 0.0
      %1933 = vmatprep.subr.mxu0 0.0
      %1934 = vmatpush1.msra.mxu0 0.0
      %1935 = vmatprep.subr.mxu0 0.0
      %1936 = vmatpush1.msra.mxu0 0.0
      %1937 = vmatprep.subr.mxu0 0.0
      %1938 = vmatpush1.msra.mxu0 0.0
      %1939 = vmatprep.subr.mxu0 0.0
      %1940 = vmatpush1.msra.mxu0 0.0
      %1941 = vmatprep.mubr.f32.mxu0 0.0
      %v1942 = vand.u32 %v1098, 4294901760
      %1943 = vmatmul.mubr.f32.gmra.mrb[0].mxu0 %v1942
      %v1944 = vpop.f32.mrb[0].mxu0
      %v1945 = vadd.f32 %v1868, %v1944
      %v1946 = vpop.f32.mrb[0].mxu0
      %1947 = vdwg.mxu0
      %1948 = vmatprep.subr.mxu0 0.0
      %v1949 = vand.u32 %v1092, 4294901760
      %1950 = vmatpush1.msra.mxu0 %v1949
      %1951 = vmatprep.subr.mxu0 0.0
      %v1952 = vand.u32 %v1093, 4294901760
      %1953 = vmatpush1.msra.mxu0 %v1952
      %1954 = vmatprep.subr.mxu0 0.0
      %1955 = vmatpush1.msra.mxu0 0.0
      %1956 = vmatprep.subr.mxu0 0.0
      %1957 = vmatpush1.msra.mxu0 0.0
      %1958 = vmatprep.subr.mxu0 0.0
      %1959 = vmatpush1.msra.mxu0 0.0
      %1960 = vmatprep.subr.mxu0 0.0
      %1961 = vmatpush1.msra.mxu0 0.0
      %1962 = vmatprep.subr.mxu0 0.0
      %1963 = vmatpush1.msra.mxu0 0.0
      %1964 = vmatprep.subr.mxu0 0.0
      %1965 = vmatpush1.msra.mxu0 0.0
      %1966 = vmatprep.subr.mxu0 0.0
      %1967 = vmatpush1.msra.mxu0 0.0
      %1968 = vmatprep.subr.mxu0 0.0
      %1969 = vmatpush1.msra.mxu0 0.0
      %1970 = vmatprep.subr.mxu0 0.0
      %1971 = vmatpush1.msra.mxu0 0.0
      %1972 = vmatprep.subr.mxu0 0.0
      %1973 = vmatpush1.msra.mxu0 0.0
      %1974 = vmatprep.subr.mxu0 0.0
      %1975 = vmatpush1.msra.mxu0 0.0
      %1976 = vmatprep.subr.mxu0 0.0
      %1977 = vmatpush1.msra.mxu0 0.0
      %1978 = vmatprep.subr.mxu0 0.0
      %1979 = vmatpush1.msra.mxu0 0.0
      %1980 = vmatprep.subr.mxu0 0.0
      %1981 = vmatpush1.msra.mxu0 0.0
      %1982 = vmatprep.subr.mxu0 0.0
      %1983 = vmatpush1.msra.mxu0 0.0
      %1984 = vmatprep.subr.mxu0 0.0
      %1985 = vmatpush1.msra.mxu0 0.0
      %1986 = vmatprep.subr.mxu0 0.0
      %1987 = vmatpush1.msra.mxu0 0.0
      %1988 = vmatprep.subr.mxu0 0.0
      %1989 = vmatpush1.msra.mxu0 0.0
      %1990 = vmatprep.subr.mxu0 0.0
      %1991 = vmatpush1.msra.mxu0 0.0
      %1992 = vmatprep.subr.mxu0 0.0
      %1993 = vmatpush1.msra.mxu0 0.0
      %1994 = vmatprep.subr.mxu0 0.0
      %1995 = vmatpush1.msra.mxu0 0.0
      %1996 = vmatprep.subr.mxu0 0.0
      %1997 = vmatpush1.msra.mxu0 0.0
      %1998 = vmatprep.subr.mxu0 0.0
      %1999 = vmatpush1.msra.mxu0 0.0
      %2000 = vmatprep.subr.mxu0 0.0
      %2001 = vmatpush1.msra.mxu0 0.0
      %2002 = vmatprep.subr.mxu0 0.0
      %2003 = vmatpush1.msra.mxu0 0.0
      %2004 = vmatprep.subr.mxu0 0.0
      %2005 = vmatpush1.msra.mxu0 0.0
      %2006 = vmatprep.subr.mxu0 0.0
      %2007 = vmatpush1.msra.mxu0 0.0
      %2008 = vmatprep.subr.mxu0 0.0
      %2009 = vmatpush1.msra.mxu0 0.0
      %2010 = vmatprep.subr.mxu0 0.0
      %2011 = vmatpush1.msra.mxu0 0.0
      %2012 = vmatprep.subr.mxu0 0.0
      %2013 = vmatpush1.msra.mxu0 0.0
      %2014 = vmatprep.mubr.f32.mxu0 0.0
      %v2015 = vand.u32 %v1098, 4294901760
      %2016 = vmatmul.mubr.f32.gmra.mrb[0].mxu0 %v2015
      %v2017 = vpop.f32.mrb[0].mxu0
      %v2018 = vadd.f32 %v1945, %v2017
      %v2019 = vpop.f32.mrb[0].mxu0
      %2020 = vdwg.mxu0
      %v2021 = vadd.f32 %v1561, %v2018
      %2022 = vst [vmem:[#allocation9] sm:$0xff] %v2021
    $region37: #{tpu_custom_call.1} parent=1 // pred_fallthru
      _
    // Predicated region
    $region38: #{tpu_custom_call.1} parent=1 // pred_check
      _
    $region39: #{tpu_custom_call.1} parent=1 // pred_check_branch
      %2024 = sbr.rel (0) target = $region41
    $region40: #{tpu_custom_call.1} parent=1 // pred_region
      %s2026 = ssub.s32 128, 128
      %2027 = vsyncadd [#allocation4], %s2026
      %s2029 = sshll.u32 [#allocation8], 4
      %s2030 = int_to_ptr.vmem [resolvable:$true] %s2029
      %2032 = dma.vmem_to_hbm [thread:$0]  %s2030, 128, %s3, [#allocation4]
    $region41: #{tpu_custom_call.1} parent=1 // pred_fallthru
      _
    // Predicated region
    $region42: #{tpu_custom_call.1} parent=1 // pred_check
      _
    $region43: #{tpu_custom_call.1} parent=1 // pred_check_branch
      %2034 = sbr.rel (0) target = $region45
    $region44: #{tpu_custom_call.1} parent=1 // pred_region
      %s2036 = ssub.s32 128, 128
      %2037 = vsyncadd [#allocation10], %s2036
      %s2039 = sshll.u32 [#allocation9], 4
      %s2040 = int_to_ptr.vmem [resolvable:$true] %s2039
      %2042 = dma.vmem_to_hbm [thread:$0]  %s2040, 128, %s4, [#allocation10]
    $region45: #{tpu_custom_call.1} parent=1 // pred_fallthru
      _
    // Predicated region
    $region46: #{tpu_custom_call.1} parent=1 // pred_check
      _
    $region47: #{tpu_custom_call.1} parent=1 // pred_check_branch
      %2044 = sbr.rel (0) target = $region49
    $region48: #{tpu_custom_call.1} parent=1 // pred_region
      %2045 = dma.done [#allocation4], 128
    $region49: #{tpu_custom_call.1} parent=1 // pred_fallthru
      _
    // Predicated region
    $region50: #{tpu_custom_call.1} parent=1 // pred_check
      _
    $region51: #{tpu_custom_call.1} parent=1 // pred_check_branch
      %2047 = sbr.rel (0) target = $region53
    $region52: #{tpu_custom_call.1} parent=1 // pred_region
      %2048 = dma.done [#allocation10], 128
    $region53: #{tpu_custom_call.1} parent=1 // pred_fallthru
      _
    %2049 = vsyncpa [#allocation3], 1
    %2050 = vsyncpa [#allocation6], 1
    %2051 = vsyncpa [#allocation4], 1
    %2052 = vsyncpa [#allocation10], 1

</llo_original>
